<compile_context>
chip_gen: v7x
topology: tpu7x:2x2x1
jax: 0.10.0
libtpu: 0.0.40
codegen_flags: <defaults>
</compile_context>

<pallas_src>
import functools

import jax
import jax.numpy as jnp
import numpy as np
from jax.experimental import pallas as pl
from jax.experimental.pallas import tpu as pltpu

K5 = 5  # large conv kernel size (conv2); conv1's 3x3x3 taps are embedded in it.


def _round_up(x, m):
    return (x + m - 1) // m * m


# --------------------------------------------------------------------- Pallas kernels
def _conv_kernel(z_ref, w_ref, b_ref, m_ref, y_ref, st_ref, *, racc, hp, wc2):
    """Fused conv1+conv2 as W-banded matmuls, accumulated over the depth tap kd.

    Grid: (N, K5).  Axis 0 ("parallel") = batch, axis 1 ("arbitrary") = depth-tap
    reduction; the output block (same index across kd) is the accumulator.

      z_ref : (1, Dp*Hp, Wp*Cin)    bf16  padded input, rows = (depth, height)
      w_ref : (1, K5, Wp*Cin, W*2C) bf16  banded weights for this kd, one per kh
      b_ref : (1, W*2C)             f32   bias, tiled over w
      m_ref : (RACC, 1)             f32   valid-row mask (h < H)
      y_ref : (1, RACC, W*2C)       f32   conv output (+ garbage rows h >= H)
      st_ref: (1, 2, W*2C)          f32   per-batch [sum, sum_sq] over valid rows
    """
    kd = pl.program_id(1)

    @pl.when(kd == 0)
    def _init():
        y_ref[0] = jnp.broadcast_to(b_ref[...], (racc, wc2))

    rs = pl.multiple_of(kd * hp, 8)                       # hp is a multiple of 8
    zwin = z_ref[0, pl.ds(rs, racc + K5 - 1), :]          # (RACC+4, Wp*Cin)
    for kh in range(K5):                                  # short static loop
        y_ref[0] += jnp.dot(zwin[kh:kh + racc, :], w_ref[0, kh],
                            preferred_element_type=jnp.float32)

    @pl.when(kd == K5 - 1)
    def _finalize():
        y = y_ref[0]
        yv = y * m_ref[...]                               # zero out padding rows
        st_ref[0, 0:1, :] = jnp.sum(yv, axis=0, keepdims=True)
        st_ref[0, 1:2, :] = jnp.sum(yv * y, axis=0, keepdims=True)


def _bn_relu_kernel(y_ref, sc_ref, sh_ref, o_ref):
    # y: (1, RACC, W*2C); sc/sh: (1, W*2C) per-(w, c)-column scale / shift.
    o_ref[0] = jnp.maximum(y_ref[0] * sc_ref[...] + sh_ref[...], 0.0)


# ------------------------------------------------------------------- wrappers / glue
def _build_banded_weights(w1, w2, W, Wp):
    """(Cout,Cin,3,3,3) + (Cout,Cin,5,5,5) -> (K5, K5, Wp*Cin, W*2*Cout) band matrix."""
    Cout, Cin = w2.shape[0], w2.shape[1]
    C2 = 2 * Cout
    # combined 5x5x5 tap weights, layout (kd, kh, kw, cin, c); conv1's 3^3 taps sit
    # at offsets [1:4] of the 5-window (pad 1 vs pad 2).
    wtap = jnp.zeros((K5, K5, K5, Cin, C2), jnp.float32)
    wtap = wtap.at[1:4, 1:4, 1:4, :, :Cout].set(jnp.transpose(w1, (2, 3, 4, 1, 0)))
    wtap = wtap.at[:, :, :, :, Cout:].set(jnp.transpose(w2, (2, 3, 4, 1, 0)))
    # band along W:  wband[kd, kh, ww, ci, w, c] = wtap[kd, kh, ww - w, ci, c]
    wband = jnp.zeros((K5, K5, Wp, Cin, W, C2), jnp.float32)
    for w in range(W):
        for kw in range(K5):
            wband = wband.at[:, :, w + kw, :, w, :].set(wtap[:, :, kw])
    return wband.reshape(K5, K5, Wp * Cin, W * C2).astype(jnp.bfloat16)


def init_params(key, in_ch, out_ch):
    ks = jax.random.split(key, 4)
    return {
        "w_conv1": jax.random.normal(ks[0], (out_ch, in_ch, 3, 3, 3), jnp.float32) * 0.05,
        "b_conv1": jax.random.normal(ks[1], (out_ch,), jnp.float32) * 0.05,
        "w_conv2": jax.random.normal(ks[2], (out_ch, in_ch, 5, 5, 5), jnp.float32) * 0.02,
        "b_conv2": jax.random.normal(ks[3], (out_ch,), jnp.float32) * 0.05,
        "bn_gamma": jnp.ones((2 * out_ch,), jnp.float32),   # nn.init.constant_(1)
        "bn_beta": jnp.zeros((2 * out_ch,), jnp.float32),   # nn.init.constant_(0)
    }


def cba_forward(params, x_ncdhw, *, eps=1e-5):
    N, Cin, D, H, W = x_ncdhw.shape
    w1, w2 = params["w_conv1"], params["w_conv2"]
    Cout = w1.shape[0]
    C2 = 2 * Cout
    Hp = _round_up(H + 4, 8)          # padded H rows per depth slice (multiple of 8)
    Wp = W + 4
    Dp = D + 5                        # pad depth (2, 3): last kd window stays in-bounds
    WC2 = W * C2
    RACC = D * Hp                     # accumulator rows (d, h), h in [0, Hp)

    # ---- layout plumbing (cheap XLA): channels-last, pad once, flatten ------------
    xt = jnp.transpose(x_ncdhw, (0, 2, 3, 4, 1))                      # NDHWC
    xp = jnp.pad(xt, ((0, 0), (2, Dp - D - 2), (2, Hp - H - 2), (2, 2), (0, 0)))
    z = xp.reshape(N, Dp * Hp, Wp * Cin).astype(jnp.bfloat16)

    wband = _build_banded_weights(w1, w2, W, Wp)                       # (5,5,WpCin,WC2)
    bias = jnp.tile(jnp.concatenate([params["b_conv1"], params["b_conv2"]]), W)
    bias = bias.reshape(1, WC2).astype(jnp.float32)
    mask = ((jnp.arange(RACC) % Hp) < H).astype(jnp.float32).reshape(RACC, 1)

    # ---- kernel 1: fused conv1 + conv2 (+bias, + per-batch sum / sum_sq) ----------
    conv_cost = pl.CostEstimate(
        flops=2 * N * K5 * K5 * RACC * (Wp * Cin) * WC2,
        transcendentals=0,
        bytes_accessed=(z.size * 2 + wband.size * 2
                        + N * RACC * WC2 * 4 + N * 2 * WC2 * 4),
    )
    y, st = pl.pallas_call(
        functools.partial(_conv_kernel, racc=RACC, hp=Hp, wc2=WC2),
        grid=(N, K5),
        in_specs=[
            pl.BlockSpec((1, Dp * Hp, Wp * Cin), lambda n, k: (n, 0, 0)),
            pl.BlockSpec((1, K5, Wp * Cin, WC2), lambda n, k: (k, 0, 0, 0)),
            pl.BlockSpec((1, WC2), lambda n, k: (0, 0)),
            pl.BlockSpec((RACC, 1), lambda n, k: (0, 0)),
        ],
        out_specs=(
            pl.BlockSpec((1, RACC, WC2), lambda n, k: (n, 0, 0)),
            pl.BlockSpec((1, 2, WC2), lambda n, k: (n, 0, 0)),
        ),
        out_shape=(
            jax.ShapeDtypeStruct((N, RACC, WC2), jnp.float32),
            jax.ShapeDtypeStruct((N, 2, WC2), jnp.float32),
        ),
        compiler_params=pltpu.CompilerParams(
            dimension_semantics=("parallel", "arbitrary"),
            vmem_limit_bytes=32 * 1024 * 1024,
        ),
        cost_estimate=conv_cost,
    )(z, wband, bias, mask)

    # ---- BatchNorm batch statistics (training mode, biased var): ~4*C scalars -----
    cnt = N * D * H * W
    s = jnp.sum(st, axis=0).reshape(2, W, C2).sum(axis=1)             # (2, C2)
    mean = s[0] / cnt
    var = s[1] / cnt - mean * mean
    scale_c = params["bn_gamma"] * jax.lax.rsqrt(var + eps)
    shift_c = params["bn_beta"] - mean * scale_c
    scale = jnp.tile(scale_c, W).reshape(1, WC2)
    shift = jnp.tile(shift_c, W).reshape(1, WC2)

    # ---- kernel 2: normalize + ReLU (lane-dense elementwise) ----------------------
    o = pl.pallas_call(
        _bn_relu_kernel,
        grid=(N,),
        in_specs=[
            pl.BlockSpec((1, RACC, WC2), lambda n: (n, 0, 0)),
            pl.BlockSpec((1, WC2), lambda n: (0, 0)),
            pl.BlockSpec((1, WC2), lambda n: (0, 0)),
        ],
        out_specs=pl.BlockSpec((1, RACC, WC2), lambda n: (n, 0, 0)),
        out_shape=jax.ShapeDtypeStruct((N, RACC, WC2), jnp.float32),
        compiler_params=pltpu.CompilerParams(
            dimension_semantics=("parallel",),
            vmem_limit_bytes=32 * 1024 * 1024,
        ),
    )(y, scale, shift)

    # ---- drop padded h rows, un-interleave (w, c), return NCDHW (one fused copy) --
    out = o.reshape(N, D, Hp, W, C2)[:, :, :H]                        # (N, D, H, W, C2)
    return jnp.transpose(out, (0, 4, 1, 2, 3))                        # (N, 2*Cout, D, H, W)


# -------------------------------------------------------------------- pure-JAX reference
def _reference_forward(params, x, eps=1e-5):
    dn = ("NCDHW", "OIDHW", "NCDHW")

    def conv(w, b, pad):
        y = jax.lax.conv_general_dilated(x, w, (1, 1, 1), [(pad, pad)] * 3,
                                         dimension_numbers=dn)
        return y + b[None, :, None, None, None]

    c1 = conv(params["w_conv1"], params["b_conv1"], 1)
    c2 = conv(params["w_conv2"], params["b_conv2"], 2)
    o = jnp.concatenate([c1, c2], axis=1)
    m = jnp.mean(o, axis=(0, 2, 3, 4), keepdims=True)
    v = jnp.mean((o - m) ** 2, axis=(0, 2, 3, 4), keepdims=True)      # biased (train BN)
    g = params["bn_gamma"][None, :, None, None, None]
    b = params["bn_beta"][None, :, None, None, None]
    return jnp.maximum((o - m) * jax.lax.rsqrt(v + eps) * g + b, 0.0)


if __name__ == "__main__":
    key = jax.random.PRNGKey(0)
    kx, kp = jax.random.split(key)

    N, Cin, Cout, D, H, W = 2, 4, 16, 8, 8, 8
    x = jax.random.normal(kx, (N, Cin, D, H, W), jnp.float32)
    params = init_params(kp, Cin, Cout)

    out = jax.block_until_ready(jax.jit(cba_forward)(params, x))
    assert out.shape == (N, 2 * Cout, D, H, W), out.shape

    ref = jax.block_until_ready(_reference_forward(params, x))
    # bf16 matmul operands (f32 accumulation) vs. a pure-f32 reference.
    np.testing.assert_allclose(np.asarray(out), np.asarray(ref), atol=3e-2, rtol=3e-2)

    print("KERNEL_OK")
</pallas_src>

<mosaic_0001>
module attributes {stable_mosaic.version = 11 : i64} {
  func.func @_conv_kernel(%arg0: i32, %arg1: i32, %arg2: memref<1x208x48xbf16, #tpu.memory_space<vmem>>, %arg3: memref<1x5x48x256xbf16, #tpu.memory_space<vmem>>, %arg4: memref<1x256xf32, #tpu.memory_space<vmem>>, %arg5: memref<128x1xf32, #tpu.memory_space<vmem>>, %arg6: memref<1x128x256xf32, #tpu.memory_space<vmem>>, %arg7: memref<1x2x256xf32, #tpu.memory_space<vmem>>) attributes {dimension_semantics = [#tpu.dimension_semantics<parallel>, #tpu.dimension_semantics<arbitrary>], iteration_bounds = array<i64: 2, 5>, scalar_prefetch = 0 : i64, scratch_operands = 0 : i64, tpu.core_type = #tpu.core_type<tc>, window_params = [{transform_indices = @transform_0, window_bounds = array<i64: 1, 208, 48>}, {transform_indices = @transform_1, window_bounds = array<i64: 1, 5, 48, 256>}, {pipeline_mode = #tpu.pipeline_mode<synchronous>, transform_indices = @transform_2, window_bounds = array<i64: 1, 256>}, {pipeline_mode = #tpu.pipeline_mode<synchronous>, transform_indices = @transform_3, window_bounds = array<i64: 128, 1>}, {transform_indices = @transform_4, window_bounds = array<i64: 1, 128, 256>}, {transform_indices = @transform_5, window_bounds = array<i64: 1, 2, 256>}]} {
    %c0_i32 = arith.constant 0 : i32
    %0 = arith.cmpi eq, %arg1, %c0_i32 : i32
    %1 = arith.extui %0 : i1 to i32
    %c0_i32_0 = arith.constant 0 : i32
    %2 = arith.cmpi ne, %1, %c0_i32_0 : i32
    scf.if %2 {
      %c0_53 = arith.constant 0 : index
      %c0_54 = arith.constant 0 : index
      %61 = vector.load %arg4[%c0_53, %c0_54] : memref<1x256xf32, #tpu.memory_space<vmem>>, vector<1x256xf32>
      %62 = vector.shape_cast %61 : vector<1x256xf32> to vector<1x256xf32>
      %63 = vector.broadcast %62 : vector<1x256xf32> to vector<128x256xf32>
      %c0_55 = arith.constant 0 : index
      %c0_56 = arith.constant 0 : index
      %c0_57 = arith.constant 0 : index
      %64 = vector.load %arg6[%c0_55, %c0_56, %c0_57] : memref<1x128x256xf32, #tpu.memory_space<vmem>>, vector<1x128x256xf32>
      %65 = vector.shape_cast %64 : vector<1x128x256xf32> to vector<128x256xf32>
      %66 = vector.shape_cast %63 : vector<128x256xf32> to vector<1x128x256xf32>
      tpu.vector_store %arg6[%c0_55, %c0_56, %c0_57], %66 {strides = array<i32>} : memref<1x128x256xf32, #tpu.memory_space<vmem>>, vector<1x128x256xf32>,
    } else {
    }
    %c16_i32 = arith.constant 16 : i32
    %3 = arith.muli %arg1, %c16_i32 : i32
    %4 = tpu.assume_multiple %3, 8 : i32
    %c0 = arith.constant 0 : index
    %5 = arith.index_cast %4 : i32 to index
    %c0_1 = arith.constant 0 : index
    %6 = vector.load %arg2[%c0, %5, %c0_1] : memref<1x208x48xbf16, #tpu.memory_space<vmem>>, vector<1x132x48xbf16>
    %7 = vector.shape_cast %6 : vector<1x132x48xbf16> to vector<132x48xbf16>
    %c0_2 = arith.constant 0 : index
    %c0_3 = arith.constant 0 : index
    %c0_4 = arith.constant 0 : index
    %8 = vector.load %arg6[%c0_2, %c0_3, %c0_4] : memref<1x128x256xf32, #tpu.memory_space<vmem>>, vector<1x128x256xf32>
    %9 = vector.shape_cast %8 : vector<1x128x256xf32> to vector<128x256xf32>
    %10 = vector.extract_strided_slice %7 {offsets = [0, 0], sizes = [128, 48], strides = [1, 1]} : vector<132x48xbf16> to vector<128x48xbf16>
    %c0_5 = arith.constant 0 : index
    %c0_6 = arith.constant 0 : index
    %c0_7 = arith.constant 0 : index
    %c0_8 = arith.constant 0 : index
    %11 = vector.load %arg3[%c0_5, %c0_6, %c0_7, %c0_8] : memref<1x5x48x256xbf16, #tpu.memory_space<vmem>>, vector<1x1x48x256xbf16>
    %12 = vector.shape_cast %11 : vector<1x1x48x256xbf16> to vector<48x256xbf16>
    %cst = arith.constant dense<0.000000e+00> : vector<128x256xf32>
    %13 = tpu.matmul %10, %12, %cst {dimension_numbers = #tpu.dot_dimension_numbers<[1], [0], [0], [1], [0, 0, 1, 1], [], []>} : vector<128x48xbf16>, vector<48x256xbf16>, vector<128x256xf32> -> vector<128x256xf32>
    %14 = arith.addf %9, %13 : vector<128x256xf32>
    %c0_9 = arith.constant 0 : index
    %c0_10 = arith.constant 0 : index
    %c0_11 = arith.constant 0 : index
    %15 = vector.load %arg6[%c0_9, %c0_10, %c0_11] : memref<1x128x256xf32, #tpu.memory_space<vmem>>, vector<1x128x256xf32>
    %16 = vector.shape_cast %15 : vector<1x128x256xf32> to vector<128x256xf32>
    %17 = vector.shape_cast %14 : vector<128x256xf32> to vector<1x128x256xf32>
    tpu.vector_store %arg6[%c0_9, %c0_10, %c0_11], %17 {strides = array<i32>} : memref<1x128x256xf32, #tpu.memory_space<vmem>>, vector<1x128x256xf32>,
    %c0_12 = arith.constant 0 : index
    %c0_13 = arith.constant 0 : index
    %c0_14 = arith.constant 0 : index
    %18 = vector.load %arg6[%c0_12, %c0_13, %c0_14] : memref<1x128x256xf32, #tpu.memory_space<vmem>>, vector<1x128x256xf32>
    %19 = vector.shape_cast %18 : vector<1x128x256xf32> to vector<128x256xf32>
    %20 = vector.extract_strided_slice %7 {offsets = [1, 0], sizes = [128, 48], strides = [1, 1]} : vector<132x48xbf16> to vector<128x48xbf16>
    %c0_15 = arith.constant 0 : index
    %c1 = arith.constant 1 : index
    %c0_16 = arith.constant 0 : index
    %c0_17 = arith.constant 0 : index
    %21 = vector.load %arg3[%c0_15, %c1, %c0_16, %c0_17] : memref<1x5x48x256xbf16, #tpu.memory_space<vmem>>, vector<1x1x48x256xbf16>
    %22 = vector.shape_cast %21 : vector<1x1x48x256xbf16> to vector<48x256xbf16>
    %cst_18 = arith.constant dense<0.000000e+00> : vector<128x256xf32>
    %23 = tpu.matmul %20, %22, %cst_18 {dimension_numbers = #tpu.dot_dimension_numbers<[1], [0], [0], [1], [0, 0, 1, 1], [], []>} : vector<128x48xbf16>, vector<48x256xbf16>, vector<128x256xf32> -> vector<128x256xf32>
    %24 = arith.addf %19, %23 : vector<128x256xf32>
    %c0_19 = arith.constant 0 : index
    %c0_20 = arith.constant 0 : index
    %c0_21 = arith.constant 0 : index
    %25 = vector.load %arg6[%c0_19, %c0_20, %c0_21] : memref<1x128x256xf32, #tpu.memory_space<vmem>>, vector<1x128x256xf32>
    %26 = vector.shape_cast %25 : vector<1x128x256xf32> to vector<128x256xf32>
    %27 = vector.shape_cast %24 : vector<128x256xf32> to vector<1x128x256xf32>
    tpu.vector_store %arg6[%c0_19, %c0_20, %c0_21], %27 {strides = array<i32>} : memref<1x128x256xf32, #tpu.memory_space<vmem>>, vector<1x128x256xf32>,
    %c0_22 = arith.constant 0 : index
    %c0_23 = arith.constant 0 : index
    %c0_24 = arith.constant 0 : index
    %28 = vector.load %arg6[%c0_22, %c0_23, %c0_24] : memref<1x128x256xf32, #tpu.memory_space<vmem>>, vector<1x128x256xf32>
    %29 = vector.shape_cast %28 : vector<1x128x256xf32> to vector<128x256xf32>
    %30 = vector.extract_strided_slice %7 {offsets = [2, 0], sizes = [128, 48], strides = [1, 1]} : vector<132x48xbf16> to vector<128x48xbf16>
    %c0_25 = arith.constant 0 : index
    %c2 = arith.constant 2 : index
    %c0_26 = arith.constant 0 : index
    %c0_27 = arith.constant 0 : index
    %31 = vector.load %arg3[%c0_25, %c2, %c0_26, %c0_27] : memref<1x5x48x256xbf16, #tpu.memory_space<vmem>>, vector<1x1x48x256xbf16>
    %32 = vector.shape_cast %31 : vector<1x1x48x256xbf16> to vector<48x256xbf16>
    %cst_28 = arith.constant dense<0.000000e+00> : vector<128x256xf32>
    %33 = tpu.matmul %30, %32, %cst_28 {dimension_numbers = #tpu.dot_dimension_numbers<[1], [0], [0], [1], [0, 0, 1, 1], [], []>} : vector<128x48xbf16>, vector<48x256xbf16>, vector<128x256xf32> -> vector<128x256xf32>
    %34 = arith.addf %29, %33 : vector<128x256xf32>
    %c0_29 = arith.constant 0 : index
    %c0_30 = arith.constant 0 : index
    %c0_31 = arith.constant 0 : index
    %35 = vector.load %arg6[%c0_29, %c0_30, %c0_31] : memref<1x128x256xf32, #tpu.memory_space<vmem>>, vector<1x128x256xf32>
    %36 = vector.shape_cast %35 : vector<1x128x256xf32> to vector<128x256xf32>
    %37 = vector.shape_cast %34 : vector<128x256xf32> to vector<1x128x256xf32>
    tpu.vector_store %arg6[%c0_29, %c0_30, %c0_31], %37 {strides = array<i32>} : memref<1x128x256xf32, #tpu.memory_space<vmem>>, vector<1x128x256xf32>,
    %c0_32 = arith.constant 0 : index
    %c0_33 = arith.constant 0 : index
    %c0_34 = arith.constant 0 : index
    %38 = vector.load %arg6[%c0_32, %c0_33, %c0_34] : memref<1x128x256xf32, #tpu.memory_space<vmem>>, vector<1x128x256xf32>
    %39 = vector.shape_cast %38 : vector<1x128x256xf32> to vector<128x256xf32>
    %40 = vector.extract_strided_slice %7 {offsets = [3, 0], sizes = [128, 48], strides = [1, 1]} : vector<132x48xbf16> to vector<128x48xbf16>
    %c0_35 = arith.constant 0 : index
    %c3 = arith.constant 3 : index
    %c0_36 = arith.constant 0 : index
    %c0_37 = arith.constant 0 : index
    %41 = vector.load %arg3[%c0_35, %c3, %c0_36, %c0_37] : memref<1x5x48x256xbf16, #tpu.memory_space<vmem>>, vector<1x1x48x256xbf16>
    %42 = vector.shape_cast %41 : vector<1x1x48x256xbf16> to vector<48x256xbf16>
    %cst_38 = arith.constant dense<0.000000e+00> : vector<128x256xf32>
    %43 = tpu.matmul %40, %42, %cst_38 {dimension_numbers = #tpu.dot_dimension_numbers<[1], [0], [0], [1], [0, 0, 1, 1], [], []>} : vector<128x48xbf16>, vector<48x256xbf16>, vector<128x256xf32> -> vector<128x256xf32>
    %44 = arith.addf %39, %43 : vector<128x256xf32>
    %c0_39 = arith.constant 0 : index
    %c0_40 = arith.constant 0 : index
    %c0_41 = arith.constant 0 : index
    %45 = vector.load %arg6[%c0_39, %c0_40, %c0_41] : memref<1x128x256xf32, #tpu.memory_space<vmem>>, vector<1x128x256xf32>
    %46 = vector.shape_cast %45 : vector<1x128x256xf32> to vector<128x256xf32>
    %47 = vector.shape_cast %44 : vector<128x256xf32> to vector<1x128x256xf32>
    tpu.vector_store %arg6[%c0_39, %c0_40, %c0_41], %47 {strides = array<i32>} : memref<1x128x256xf32, #tpu.memory_space<vmem>>, vector<1x128x256xf32>,
    %c0_42 = arith.constant 0 : index
    %c0_43 = arith.constant 0 : index
    %c0_44 = arith.constant 0 : index
    %48 = vector.load %arg6[%c0_42, %c0_43, %c0_44] : memref<1x128x256xf32, #tpu.memory_space<vmem>>, vector<1x128x256xf32>
    %49 = vector.shape_cast %48 : vector<1x128x256xf32> to vector<128x256xf32>
    %50 = vector.extract_strided_slice %7 {offsets = [4, 0], sizes = [128, 48], strides = [1, 1]} : vector<132x48xbf16> to vector<128x48xbf16>
    %c0_45 = arith.constant 0 : index
    %c4 = arith.constant 4 : index
    %c0_46 = arith.constant 0 : index
    %c0_47 = arith.constant 0 : index
    %51 = vector.load %arg3[%c0_45, %c4, %c0_46, %c0_47] : memref<1x5x48x256xbf16, #tpu.memory_space<vmem>>, vector<1x1x48x256xbf16>
    %52 = vector.shape_cast %51 : vector<1x1x48x256xbf16> to vector<48x256xbf16>
    %cst_48 = arith.constant dense<0.000000e+00> : vector<128x256xf32>
    %53 = tpu.matmul %50, %52, %cst_48 {dimension_numbers = #tpu.dot_dimension_numbers<[1], [0], [0], [1], [0, 0, 1, 1], [], []>} : vector<128x48xbf16>, vector<48x256xbf16>, vector<128x256xf32> -> vector<128x256xf32>
    %54 = arith.addf %49, %53 : vector<128x256xf32>
    %c0_49 = arith.constant 0 : index
    %c0_50 = arith.constant 0 : index
    %c0_51 = arith.constant 0 : index
    %55 = vector.load %arg6[%c0_49, %c0_50, %c0_51] : memref<1x128x256xf32, #tpu.memory_space<vmem>>, vector<1x128x256xf32>
    %56 = vector.shape_cast %55 : vector<1x128x256xf32> to vector<128x256xf32>
    %57 = vector.shape_cast %54 : vector<128x256xf32> to vector<1x128x256xf32>
    tpu.vector_store %arg6[%c0_49, %c0_50, %c0_51], %57 {strides = array<i32>} : memref<1x128x256xf32, #tpu.memory_space<vmem>>, vector<1x128x256xf32>,
    %c4_i32 = arith.constant 4 : i32
    %58 = arith.cmpi eq, %arg1, %c4_i32 : i32
    %59 = arith.extui %58 : i1 to i32
    %c0_i32_52 = arith.constant 0 : i32
    %60 = arith.cmpi ne, %59, %c0_i32_52 : i32
    scf.if %60 {
      %c0_53 = arith.constant 0 : index
      %c0_54 = arith.constant 0 : index
      %c0_55 = arith.constant 0 : index
      %61 = vector.load %arg6[%c0_53, %c0_54, %c0_55] : memref<1x128x256xf32, #tpu.memory_space<vmem>>, vector<1x128x256xf32>
      %62 = vector.shape_cast %61 : vector<1x128x256xf32> to vector<128x256xf32>
      %c0_56 = arith.constant 0 : index
      %c0_57 = arith.constant 0 : index
      %63 = vector.load %arg5[%c0_56, %c0_57] : memref<128x1xf32, #tpu.memory_space<vmem>>, vector<128x1xf32>
      %64 = vector.broadcast %63 : vector<128x1xf32> to vector<128x256xf32>
      %65 = arith.mulf %62, %64 : vector<128x256xf32>
      %cst_58 = arith.constant dense<0.000000e+00> : vector<256xf32>
      %66 = vector.multi_reduction <add>, %65, %cst_58 [0] : vector<128x256xf32> to vector<256xf32>
      %67 = vector.shape_cast %66 : vector<256xf32> to vector<1x256xf32>
      %c0_59 = arith.constant 0 : index
      %c0_60 = arith.constant 0 : index
      %c0_61 = arith.constant 0 : index
      %68 = vector.load %arg7[%c0_59, %c0_60, %c0_61] : memref<1x2x256xf32, #tpu.memory_space<vmem>>, vector<1x1x256xf32>
      %69 = vector.shape_cast %68 : vector<1x1x256xf32> to vector<1x256xf32>
      %70 = vector.shape_cast %67 : vector<1x256xf32> to vector<1x1x256xf32>
      tpu.vector_store %arg7[%c0_59, %c0_60, %c0_61], %70 {strides = array<i32>} : memref<1x2x256xf32, #tpu.memory_space<vmem>>, vector<1x1x256xf32>,
      %71 = arith.mulf %65, %62 : vector<128x256xf32>
      %cst_62 = arith.constant dense<0.000000e+00> : vector<256xf32>
      %72 = vector.multi_reduction <add>, %71, %cst_62 [0] : vector<128x256xf32> to vector<256xf32>
      %73 = vector.shape_cast %72 : vector<256xf32> to vector<1x256xf32>
      %c0_63 = arith.constant 0 : index
      %c1_64 = arith.constant 1 : index
      %c0_65 = arith.constant 0 : index
      %74 = vector.load %arg7[%c0_63, %c1_64, %c0_65] : memref<1x2x256xf32, #tpu.memory_space<vmem>>, vector<1x1x256xf32>
      %75 = vector.shape_cast %74 : vector<1x1x256xf32> to vector<1x256xf32>
      %76 = vector.shape_cast %73 : vector<1x256xf32> to vector<1x1x256xf32>
      tpu.vector_store %arg7[%c0_63, %c1_64, %c0_65], %76 {strides = array<i32>} : memref<1x2x256xf32, #tpu.memory_space<vmem>>, vector<1x1x256xf32>,
    } else {
    }
    return
  }
  func.func @transform_0(%arg0: i32, %arg1: i32) -> (i32, i32, i32) {
    %c0_i32 = arith.constant 0 : i32
    %c0_i32_0 = arith.constant 0 : i32
    %c0_i32_1 = arith.constant 0 : i32
    return %arg0, %c0_i32, %c0_i32_0 : i32, i32, i32
  }
  func.func @transform_1(%arg0: i32, %arg1: i32) -> (i32, i32, i32, i32) {
    %c0_i32 = arith.constant 0 : i32
    %c0_i32_0 = arith.constant 0 : i32
    %c0_i32_1 = arith.constant 0 : i32
    %c0_i32_2 = arith.constant 0 : i32
    return %arg1, %c0_i32, %c0_i32_0, %c0_i32_1 : i32, i32, i32, i32
  }
  func.func @transform_2(%arg0: i32, %arg1: i32) -> (i32, i32) {
    %c0_i32 = arith.constant 0 : i32
    %c0_i32_0 = arith.constant 0 : i32
    %c0_i32_1 = arith.constant 0 : i32
    return %c0_i32, %c0_i32_0 : i32, i32
  }
  func.func @transform_3(%arg0: i32, %arg1: i32) -> (i32, i32) {
    %c0_i32 = arith.constant 0 : i32
    %c0_i32_0 = arith.constant 0 : i32
    %c0_i32_1 = arith.constant 0 : i32
    return %c0_i32, %c0_i32_0 : i32, i32
  }
  func.func @transform_4(%arg0: i32, %arg1: i32) -> (i32, i32, i32) {
    %c0_i32 = arith.constant 0 : i32
    %c0_i32_0 = arith.constant 0 : i32
    %c0_i32_1 = arith.constant 0 : i32
    return %arg0, %c0_i32, %c0_i32_0 : i32, i32, i32
  }
  func.func @transform_5(%arg0: i32, %arg1: i32) -> (i32, i32, i32) {
    %c0_i32 = arith.constant 0 : i32
    %c0_i32_0 = arith.constant 0 : i32
    %c0_i32_1 = arith.constant 0 : i32
    return %arg0, %c0_i32, %c0_i32_0 : i32, i32, i32
  }
}

module attributes {stable_mosaic.version = 11 : i64} {
  func.func @_bn_relu_kernel(%arg0: i32, %arg1: memref<1x128x256xf32, #tpu.memory_space<vmem>>, %arg2: memref<1x256xf32, #tpu.memory_space<vmem>>, %arg3: memref<1x256xf32, #tpu.memory_space<vmem>>, %arg4: memref<1x128x256xf32, #tpu.memory_space<vmem>>) attributes {dimension_semantics = [#tpu.dimension_semantics<parallel>], iteration_bounds = array<i64: 2>, scalar_prefetch = 0 : i64, scratch_operands = 0 : i64, tpu.core_type = #tpu.core_type<tc>, window_params = [{transform_indices = @transform_0, window_bounds = array<i64: 1, 128, 256>}, {pipeline_mode = #tpu.pipeline_mode<synchronous>, transform_indices = @transform_1, window_bounds = array<i64: 1, 256>}, {pipeline_mode = #tpu.pipeline_mode<synchronous>, transform_indices = @transform_2, window_bounds = array<i64: 1, 256>}, {transform_indices = @transform_3, window_bounds = array<i64: 1, 128, 256>}]} {
    %c0 = arith.constant 0 : index
    %c0_0 = arith.constant 0 : index
    %c0_1 = arith.constant 0 : index
    %0 = vector.load %arg1[%c0, %c0_0, %c0_1] : memref<1x128x256xf32, #tpu.memory_space<vmem>>, vector<1x128x256xf32>
    %1 = vector.shape_cast %0 : vector<1x128x256xf32> to vector<128x256xf32>
    %c0_2 = arith.constant 0 : index
    %c0_3 = arith.constant 0 : index
    %2 = vector.load %arg2[%c0_2, %c0_3] : memref<1x256xf32, #tpu.memory_space<vmem>>, vector<1x256xf32>
    %3 = vector.broadcast %2 : vector<1x256xf32> to vector<128x256xf32>
    %4 = arith.mulf %1, %3 : vector<128x256xf32>
    %c0_4 = arith.constant 0 : index
    %c0_5 = arith.constant 0 : index
    %5 = vector.load %arg3[%c0_4, %c0_5] : memref<1x256xf32, #tpu.memory_space<vmem>>, vector<1x256xf32>
    %6 = vector.broadcast %5 : vector<1x256xf32> to vector<128x256xf32>
    %7 = arith.addf %4, %6 : vector<128x256xf32>
    %cst = arith.constant 0.000000e+00 : f32
    %8 = vector.broadcast %cst : f32 to vector<128x256xf32>
    %9 = arith.maximumf %7, %8 : vector<128x256xf32>
    %c0_6 = arith.constant 0 : index
    %c0_7 = arith.constant 0 : index
    %c0_8 = arith.constant 0 : index
    %10 = vector.load %arg4[%c0_6, %c0_7, %c0_8] : memref<1x128x256xf32, #tpu.memory_space<vmem>>, vector<1x128x256xf32>
    %11 = vector.shape_cast %10 : vector<1x128x256xf32> to vector<128x256xf32>
    %12 = vector.shape_cast %9 : vector<128x256xf32> to vector<1x128x256xf32>
    tpu.vector_store %arg4[%c0_6, %c0_7, %c0_8], %12 {strides = array<i32>} : memref<1x128x256xf32, #tpu.memory_space<vmem>>, vector<1x128x256xf32>,
    return
  }
  func.func @transform_0(%arg0: i32) -> (i32, i32, i32) {
    %c0_i32 = arith.constant 0 : i32
    %c0_i32_0 = arith.constant 0 : i32
    %c0_i32_1 = arith.constant 0 : i32
    return %arg0, %c0_i32, %c0_i32_0 : i32, i32, i32
  }
  func.func @transform_1(%arg0: i32) -> (i32, i32) {
    %c0_i32 = arith.constant 0 : i32
    %c0_i32_0 = arith.constant 0 : i32
    %c0_i32_1 = arith.constant 0 : i32
    return %c0_i32, %c0_i32_0 : i32, i32
  }
  func.func @transform_2(%arg0: i32) -> (i32, i32) {
    %c0_i32 = arith.constant 0 : i32
    %c0_i32_0 = arith.constant 0 : i32
    %c0_i32_1 = arith.constant 0 : i32
    return %c0_i32, %c0_i32_0 : i32, i32
  }
  func.func @transform_3(%arg0: i32) -> (i32, i32, i32) {
    %c0_i32 = arith.constant 0 : i32
    %c0_i32_0 = arith.constant 0 : i32
    %c0_i32_1 = arith.constant 0 : i32
    return %arg0, %c0_i32, %c0_i32_0 : i32, i32, i32
  }
}

</mosaic_0001>

<llo_original>
// kernel: tile.18
$region0: #{tile.18}
  #allocation0 [shape = 's32[1]{0}', space=sflag, size = 0x4, scoped, tag = 'scoped memory for tile.18']
  %s0 = inlined_call_operand.vmem [shape: f32[32], index: 0, kind: input, shape index: {}]
  %s1 = inlined_call_operand.vmem [shape: f32[8,32], index: 1, kind: output, shape index: {}]
  // Predicated region
  $region2: #{tile.18} parent=0 // pred_check
    _
  $region3: #{tile.18} parent=0 // pred_check_branch
    %3 = sbr.rel (0) target = $region5
  $region4: #{tile.18} parent=0 // pred_region
    _
  $region5: #{tile.18} parent=0 // pred_fallthru
    _
  %v4 = vld [vmem:[%s0] ss:$0 sm:$0xff]
  %5 = vst [vmem:[%s1] sm:$0xff] %v4

// kernel: tile.19
$region0: #{tile.19}
  %s0 = inlined_call_operand.vmem [shape: f32[8,32], index: 0, kind: input, shape index: {}]
  %s1 = inlined_call_operand.vmem [shape: f32[1,256], index: 1, kind: output, shape index: {}]
  $region1: #{tile.19} parent=0
    #allocation0 [shape = 'u8[8192]{0}', space=vmem, size = 0x2000, scoped, tag = 'scoped mem for output reshape']
    %s2 = smov 3
    %v3 = vld [vmem:[%s0] ss:$4 sm:%s2]
    %vm4 = vcmask 261120
    %5 = vst.msk [vmem:[#allocation0] ss:$8 sm:$0x3] %vm4, %v3
    %s6 = scalar_lea.vmem %s0, 3
    %s7 = smov 3
    %v8 = vld [vmem:[%s6] ss:$4 sm:%s7]
    %9 = vrot.lane.b32.xlu0 %v8, 96
    %v10 = vpop.permute.xlu0 %9
    %vm11 = vcmask 1048320
    %12 = vst.msk [vmem:[#allocation0] ss:$8 sm:$0x3] %vm11, %v10
    %s13 = scalar_lea.vmem %s0, 2
    %s14 = smov 3
    %v15 = vld [vmem:[%s13] ss:$4 sm:%s14]
    %16 = vrot.lane.b32.xlu0 %v15, 64
    %v17 = vpop.permute.xlu0 %16
    %vm18 = vcmask 785920
    %19 = vst.msk [vmem:[#allocation0] ss:$8 sm:$0x3] %vm18, %v17
    %s20 = scalar_lea.vmem %s0, 1
    %s21 = smov 3
    %v22 = vld [vmem:[%s20] ss:$4 sm:%s21]
    %23 = vrot.lane.b32.xlu0 %v22, 32
    %v24 = vpop.permute.xlu0 %23
    %vm25 = vcmask 523520
    %26 = vst.msk [vmem:[#allocation0] ss:$8 sm:$0x3] %vm25, %v24
    %s28 = sshllo.u32 0, 1
    %v30 = vld [vmem:[#allocation0] sm:%s28]
    %s31 = sshllo.u32 0, 1
    %32 = vst [vmem:[%s1] sm:%s31] %v30
    %s33 = scalar_lea.vmem [#allocation0], 8
    %v34 = vld [vmem:[%s33] sm:%s28]
    %s35 = sshllo.u32 0, 1
    %s36 = scalar_lea.vmem %s1, 1
    %37 = vst [vmem:[%s36] sm:%s35] %v34

// kernel: cba_forward.3
$region0: #{cba_forward.3}
  #allocation0 [shape = 'u32[]', space=smem, size = 0x4, offset = 0x4, fixed_abs, tag = 'smem constant byte address 0x4 - core index']
  #allocation1 [shape = 'u32[144,128]{1,0:T(1,128)}', space=vmem, size = 0x12000, scoped, tag = 'internal scratch']
  %s0 = inlined_call_operand.vmem [shape: f32[2,128,256], index: 0, kind: input, shape index: {}]
  %s1 = inlined_call_operand.vmem [shape: f32[1,256], index: 1, kind: input, shape index: {}]
  %s2 = inlined_call_operand.vmem [shape: f32[1,256], index: 2, kind: input, shape index: {}]
  %s3 = inlined_call_operand.vmem [shape: f32[2,128,256], index: 3, kind: output, shape index: {}]
  %s4 = sld [smem:[#allocation0]]
  $region45: #{cba_forward.3} parent=0
    _
  %s6 = ssub.s32 1, %s4
  %s7 = scalar_select 0, %s6, %s4
  loop: start=0, step=1, limit=4
  $region2: #{cba_forward.3} parent=0 // loop_pre_header
    _
  $region3: #{cba_forward.3} parent=0 // loop_header
    %s9 = sphi 0, %s13
    %p10 = scmp.ge.s32.totalorder %s9, 4
    %s19 = sphi 0, %s21
    %s22 = sphi 0, %s19
    %s23 = sphi 0, %s22
    %s39 = sphi 0, %s23
    %s43 = sphi 0, %s43
    %s45 = sphi 0, %s43
    %s46 = sphi 0, %s45
    %s60 = sphi 0, %s46
    %s64 = sphi 0, %s64
    %s66 = sphi 0, %s64
    %s67 = sphi 0, %s66
    %s81 = sphi 0, %s67
    %s87 = sphi 0, %s89
    %s90 = sphi 0, %s87
    %s91 = sphi 0, %s90
    %s107 = sphi 0, %s91
  $region4: #{cba_forward.3} parent=0 // loop_header_branch
    %12 = sbr.rel (%p10) target = $region8
  $region5: #{cba_forward.3} parent=0 // loop_body
    %s14 = ssub.s32 %s9, 1
    %s15 = ssub.s32 %s9, 2
    %s16 = sadd.s32 %s9, 1
    %s17 = ssub.s32 %s9, %s16
    %p18 = scmp.eq.s32.totalorder %s17, 0
    %s20 = sadd.s32 %s19, 1
    %s21 = scalar_select %p18, %s19, %s20
    %p24 = pneg %p18
    %p25 = scmp.eq.s32.totalorder %s9, 1
    %p26 = por %p24, %p25
    %p27 = scmp.ne.s32.totalorder %s19, %s22
    %p28 = scmp.eq.s32.totalorder %s9, 0
    %p29 = por %p27, %p28
    %p30 = scmp.ne.s32.totalorder %s19, %s22
    %p31 = scmp.eq.s32.totalorder %s14, 1
    %p32 = por %p30, %p31
    %p33 = scmp.ne.s32.totalorder %s22, %s23
    %p34 = scmp.eq.s32.totalorder %s14, 0
    %p35 = por %p33, %p34
    %p36 = scmp.ne.s32.totalorder %s22, %s23
    %p37 = scmp.eq.s32.totalorder %s15, 1
    %p38 = por %p36, %p37
    %p40 = scmp.ne.s32.totalorder %s23, %s39
    %p41 = scmp.eq.s32.totalorder %s15, 0
    %p42 = por %p40, %p41
    %s44 = sadd.s32 %s43, 1
    %p47 = scmp.eq.s32.totalorder %s9, 1
    %p48 = scmp.ne.s32.totalorder %s43, %s45
    %p49 = scmp.eq.s32.totalorder %s9, 0
    %p50 = por %p48, %p49
    %p51 = scmp.ne.s32.totalorder %s43, %s45
    %p52 = scmp.eq.s32.totalorder %s14, 1
    %p53 = por %p51, %p52
    %p54 = scmp.ne.s32.totalorder %s45, %s46
    %p55 = scmp.eq.s32.totalorder %s14, 0
    %p56 = por %p54, %p55
    %p57 = scmp.ne.s32.totalorder %s45, %s46
    %p58 = scmp.eq.s32.totalorder %s15, 1
    %p59 = por %p57, %p58
    %p61 = scmp.ne.s32.totalorder %s46, %s60
    %p62 = scmp.eq.s32.totalorder %s15, 0
    %p63 = por %p61, %p62
    %s65 = sadd.s32 %s64, 1
    %p68 = scmp.eq.s32.totalorder %s9, 1
    %p69 = scmp.ne.s32.totalorder %s64, %s66
    %p70 = scmp.eq.s32.totalorder %s9, 0
    %p71 = por %p69, %p70
    %p72 = scmp.ne.s32.totalorder %s64, %s66
    %p73 = scmp.eq.s32.totalorder %s14, 1
    %p74 = por %p72, %p73
    %p75 = scmp.ne.s32.totalorder %s66, %s67
    %p76 = scmp.eq.s32.totalorder %s14, 0
    %p77 = por %p75, %p76
    %p78 = scmp.ne.s32.totalorder %s66, %s67
    %p79 = scmp.eq.s32.totalorder %s15, 1
    %p80 = por %p78, %p79
    %p82 = scmp.ne.s32.totalorder %s67, %s81
    %p83 = scmp.eq.s32.totalorder %s15, 0
    %p84 = por %p82, %p83
    %s85 = ssub.s32 %s9, %s16
    %p86 = scmp.eq.s32.totalorder %s85, 0
    %s88 = sadd.s32 %s87, 1
    %s89 = scalar_select %p86, %s87, %s88
    %p92 = pneg %p86
    %p93 = scmp.eq.s32.totalorder %s9, 1
    %p94 = por %p92, %p93
    %p95 = scmp.ne.s32.totalorder %s87, %s90
    %p96 = scmp.eq.s32.totalorder %s9, 0
    %p97 = por %p95, %p96
    %p98 = scmp.ne.s32.totalorder %s87, %s90
    %p99 = scmp.eq.s32.totalorder %s14, 1
    %p100 = por %p98, %p99
    %p101 = scmp.ne.s32.totalorder %s90, %s91
    %p102 = scmp.eq.s32.totalorder %s14, 0
    %p103 = por %p101, %p102
    %p104 = scmp.ne.s32.totalorder %s90, %s91
    %p105 = scmp.eq.s32.totalorder %s15, 1
    %p106 = por %p104, %p105
    %p108 = scmp.ne.s32.totalorder %s91, %s107
    %p109 = scmp.eq.s32.totalorder %s15, 0
    %p110 = por %p108, %p109
    %p111 = scmp.le.s32.totalorder 1, %s9
    %p112 = scmp.lt.s32.totalorder %s9, 3
    %p113 = pnand %p111, %p112
    %p114 = pneg %p113
    // Predicated region
    $region9: #{cba_forward.3} parent=5 // pred_check
      _
    $region10: #{cba_forward.3} parent=5 // pred_check_branch
      %116 = sbr.rel (%p113) target = $region12
    $region11: #{cba_forward.3} parent=5 // pred_region
      %s117 = ssub.s32 %s9, 1
      // Predicated region
      $region13: #{cba_forward.3} parent=11 // pred_check
        %p118 = pneg %p56
      $region14: #{cba_forward.3} parent=11 // pred_check_branch
        %120 = sbr.rel (%p118) target = $region16
      $region15: #{cba_forward.3} parent=11 // pred_region
        _
      $region16: #{cba_forward.3} parent=11 // pred_fallthru
        _
      // Predicated region
      $region17: #{cba_forward.3} parent=11 // pred_check
        %p121 = pneg %p77
      $region18: #{cba_forward.3} parent=11 // pred_check_branch
        %123 = sbr.rel (%p121) target = $region20
      $region19: #{cba_forward.3} parent=11 // pred_region
        _
      $region20: #{cba_forward.3} parent=11 // pred_fallthru
        _
    $region12: #{cba_forward.3} parent=5 // pred_fallthru
      _
    %p124 = scmp.lt.s32.totalorder %s9, 2
    // Predicated region
    $region21: #{cba_forward.3} parent=5 // pred_check
      %p125 = pneg %p124
    $region22: #{cba_forward.3} parent=5 // pred_check_branch
      %127 = sbr.rel (%p125) target = $region24
    $region23: #{cba_forward.3} parent=5 // pred_region
      // Predicated region
      $region25: #{cba_forward.3} parent=23 // pred_check
        %p128 = pneg %p29
      $region26: #{cba_forward.3} parent=23 // pred_check_branch
        %130 = sbr.rel (%p128) target = $region28
      $region27: #{cba_forward.3} parent=23 // pred_region
        %p131 = scmp.lt.s32.totalorder %s9, 1
        %s132 = scalar_select %p131, %s9, 1
        %s133 = smul.addr %s132, 32
        %s134 = smul.addr %s133, 8
        %s135 = scalar_lea.vmem %s0, %s134
      $region28: #{cba_forward.3} parent=23 // pred_fallthru
        _
    $region24: #{cba_forward.3} parent=5 // pred_fallthru
      _
    %p136 = scmp.le.s32.totalorder 1, %s9
    %p137 = scmp.lt.s32.totalorder %s9, 3
    %p138 = pnand %p136, %p137
    %p139 = pneg %p138
    // Predicated region
    $region29: #{cba_forward.3} parent=5 // pred_check
      _
    $region30: #{cba_forward.3} parent=5 // pred_check_branch
      %141 = sbr.rel (%p138) target = $region32
    $region31: #{cba_forward.3} parent=5 // pred_region
      %s142 = ssub.s32 %s9, 1
      %p143 = scmp.lt.s32.totalorder %s14, 1
      %s144 = scalar_select %p143, %s14, 1
      %s145 = smul.addr %s144, 32
      %s146 = smul.addr %s145, 8
      %s147 = scalar_lea.vmem %s0, %s146
      %p148 = pneg %p35
      %p149 = pneg %p32
      %p150 = pneg %p56
      %p151 = pneg %p53
      %p152 = pneg %p77
      %p153 = pneg %p74
      %p154 = pneg %p103
      %p155 = pneg %p100
      %p156 = scmp.lt.s32.totalorder %s14, 1
      %s157 = scalar_select %p156, %s14, 1
      %s158 = smul.addr %s157, 32
      %s159 = smul.addr %s158, 8
      %s160 = scalar_lea.vmem %s3, %s159
      %p161 = scmp.lt.s32.totalorder %s14, 1
      %s162 = scalar_select %p161, %s14, 1
      %s163 = smul.addr %s162, 32
      %s164 = smul.addr %s163, 8
      %s165 = scalar_lea.vmem %s0, %s164
      %p166 = scmp.lt.s32.totalorder %s14, 1
      %s167 = scalar_select %p166, %s14, 1
      %s168 = smul.addr %s167, 32
      %s169 = smul.addr %s168, 8
      %s170 = scalar_lea.vmem %s3, %s169
      %v171 = vld [vmem:[%s165] sm:$0xff]
      %v172 = vld [vmem:[%s165 + $0x8] sm:$0xff]
      %v173 = vld [vmem:[%s165 + $0x10] sm:$0xff]
      %v174 = vld [vmem:[%s165 + $0x18] sm:$0xff]
      %v175 = vld [vmem:[%s165 + $0x20] sm:$0xff]
      %v176 = vld [vmem:[%s165 + $0x28] sm:$0xff]
      %v177 = vld [vmem:[%s165 + $0x30] sm:$0xff]
      %v178 = vld [vmem:[%s165 + $0x38] sm:$0xff]
      %v179 = vld [vmem:[%s165 + $0x40] sm:$0xff]
      %v180 = vld [vmem:[%s165 + $0x48] sm:$0xff]
      %v181 = vld [vmem:[%s165 + $0x50] sm:$0xff]
      %v182 = vld [vmem:[%s165 + $0x58] sm:$0xff]
      %v183 = vld [vmem:[%s165 + $0x60] sm:$0xff]
      %v184 = vld [vmem:[%s165 + $0x68] sm:$0xff]
      %v185 = vld [vmem:[%s165 + $0x70] sm:$0xff]
      %v186 = vld [vmem:[%s165 + $0x78] sm:$0xff]
      %v187 = vld [vmem:[%s165 + $0x80] sm:$0xff]
      %v188 = vld [vmem:[%s165 + $0x88] sm:$0xff]
      %v189 = vld [vmem:[%s165 + $0x90] sm:$0xff]
      %v190 = vld [vmem:[%s165 + $0x98] sm:$0xff]
      %v191 = vld [vmem:[%s165 + $0xa0] sm:$0xff]
      %v192 = vld [vmem:[%s165 + $0xa8] sm:$0xff]
      %v193 = vld [vmem:[%s165 + $0xb0] sm:$0xff]
      %v194 = vld [vmem:[%s165 + $0xb8] sm:$0xff]
      %v195 = vld [vmem:[%s165 + $0xc0] sm:$0xff]
      %v196 = vld [vmem:[%s165 + $0xc8] sm:$0xff]
      %v197 = vld [vmem:[%s165 + $0xd0] sm:$0xff]
      %v198 = vld [vmem:[%s165 + $0xd8] sm:$0xff]
      %v199 = vld [vmem:[%s165 + $0xe0] sm:$0xff]
      %v200 = vld [vmem:[%s165 + $0xe8] sm:$0xff]
      %v201 = vld [vmem:[%s165 + $0xf0] sm:$0xff]
      %v202 = vld [vmem:[%s165 + $0xf8] sm:$0xff]
      %v203 = vld [vmem:[%s1] sm:$0x3]
      %v205 = vlaneseq
      %v206 = vshrl.u32 %v205, 7
      %v207 = vsub.s32 0, %v206
      %v208 = vrot.slane %v203, %v207
      %v209 = vlaneseq
      %v210 = vshrl.u32 %v209, 7
      %v211 = vsub.s32 1, %v210
      %v212 = vrot.slane %v203, %v211
      %v215 = vmul.f32 %v171, %v208
      %v216 = vmul.f32 %v172, %v212
      %v217 = vmul.f32 %v173, %v208
      %v218 = vmul.f32 %v174, %v212
      %v219 = vmul.f32 %v175, %v208
      %v220 = vmul.f32 %v176, %v212
      %v221 = vmul.f32 %v177, %v208
      %v222 = vmul.f32 %v178, %v212
      %v223 = vmul.f32 %v179, %v208
      %v224 = vmul.f32 %v180, %v212
      %v225 = vmul.f32 %v181, %v208
      %v226 = vmul.f32 %v182, %v212
      %v227 = vmul.f32 %v183, %v208
      %v228 = vmul.f32 %v184, %v212
      %v229 = vmul.f32 %v185, %v208
      %v230 = vmul.f32 %v186, %v212
      %v231 = vmul.f32 %v187, %v208
      %v232 = vmul.f32 %v188, %v212
      %v233 = vmul.f32 %v189, %v208
      %v234 = vmul.f32 %v190, %v212
      %v235 = vmul.f32 %v191, %v208
      %v236 = vmul.f32 %v192, %v212
      %v237 = vmul.f32 %v193, %v208
      %v238 = vmul.f32 %v194, %v212
      %v239 = vmul.f32 %v195, %v208
      %v240 = vmul.f32 %v196, %v212
      %v241 = vmul.f32 %v197, %v208
      %v242 = vmul.f32 %v198, %v212
      %v243 = vmul.f32 %v199, %v208
      %v244 = vmul.f32 %v200, %v212
      %v245 = vmul.f32 %v201, %v208
      %v246 = vmul.f32 %v202, %v212
      %v247 = vld [vmem:[%s2] sm:$0x3]
      %v249 = vlaneseq
      %v250 = vshrl.u32 %v249, 7
      %v251 = vsub.s32 0, %v250
      %v252 = vrot.slane %v247, %v251
      %v253 = vlaneseq
      %v254 = vshrl.u32 %v253, 7
      %v255 = vsub.s32 1, %v254
      %v256 = vrot.slane %v247, %v255
      %v259 = vadd.f32 %v215, %v252
      %v260 = vadd.f32 %v216, %v256
      %v261 = vadd.f32 %v217, %v252
      %v262 = vadd.f32 %v218, %v256
      %v263 = vadd.f32 %v219, %v252
      %v264 = vadd.f32 %v220, %v256
      %v265 = vadd.f32 %v221, %v252
      %v266 = vadd.f32 %v222, %v256
      %v267 = vadd.f32 %v223, %v252
      %v268 = vadd.f32 %v224, %v256
      %v269 = vadd.f32 %v225, %v252
      %v270 = vadd.f32 %v226, %v256
      %v271 = vadd.f32 %v227, %v252
      %v272 = vadd.f32 %v228, %v256
      %v273 = vadd.f32 %v229, %v252
      %v274 = vadd.f32 %v230, %v256
      %v275 = vadd.f32 %v231, %v252
      %v276 = vadd.f32 %v232, %v256
      %v277 = vadd.f32 %v233, %v252
      %v278 = vadd.f32 %v234, %v256
      %v279 = vadd.f32 %v235, %v252
      %v280 = vadd.f32 %v236, %v256
      %v281 = vadd.f32 %v237, %v252
      %v282 = vadd.f32 %v238, %v256
      %v283 = vadd.f32 %v239, %v252
      %v284 = vadd.f32 %v240, %v256
      %v285 = vadd.f32 %v241, %v252
      %v286 = vadd.f32 %v242, %v256
      %v287 = vadd.f32 %v243, %v252
      %v288 = vadd.f32 %v244, %v256
      %v289 = vadd.f32 %v245, %v252
      %v290 = vadd.f32 %v246, %v256
      %v291 = vmax.f32 %v259, 0.0
      %v292 = vmax.f32 %v260, 0.0
      %v293 = vmax.f32 %v261, 0.0
      %v294 = vmax.f32 %v262, 0.0
      %v295 = vmax.f32 %v263, 0.0
      %v296 = vmax.f32 %v264, 0.0
      %v297 = vmax.f32 %v265, 0.0
      %v298 = vmax.f32 %v266, 0.0
      %v299 = vmax.f32 %v267, 0.0
      %v300 = vmax.f32 %v268, 0.0
      %v301 = vmax.f32 %v269, 0.0
      %v302 = vmax.f32 %v270, 0.0
      %v303 = vmax.f32 %v271, 0.0
      %v304 = vmax.f32 %v272, 0.0
      %v305 = vmax.f32 %v273, 0.0
      %v306 = vmax.f32 %v274, 0.0
      %v307 = vmax.f32 %v275, 0.0
      %v308 = vmax.f32 %v276, 0.0
      %v309 = vmax.f32 %v277, 0.0
      %v310 = vmax.f32 %v278, 0.0
      %v311 = vmax.f32 %v279, 0.0
      %v312 = vmax.f32 %v280, 0.0
      %v313 = vmax.f32 %v281, 0.0
      %v314 = vmax.f32 %v282, 0.0
      %v315 = vmax.f32 %v283, 0.0
      %v316 = vmax.f32 %v284, 0.0
      %v317 = vmax.f32 %v285, 0.0
      %v318 = vmax.f32 %v286, 0.0
      %v319 = vmax.f32 %v287, 0.0
      %v320 = vmax.f32 %v288, 0.0
      %v321 = vmax.f32 %v289, 0.0
      %v322 = vmax.f32 %v290, 0.0
      %323 = vst [vmem:[%s170] sm:$0xff] %v291
      %324 = vst [vmem:[%s170 + $0x8] sm:$0xff] %v292
      %325 = vst [vmem:[%s170 + $0x10] sm:$0xff] %v293
      %326 = vst [vmem:[%s170 + $0x18] sm:$0xff] %v294
      %327 = vst [vmem:[%s170 + $0x20] sm:$0xff] %v295
      %328 = vst [vmem:[%s170 + $0x28] sm:$0xff] %v296
      %329 = vst [vmem:[%s170 + $0x30] sm:$0xff] %v297
      %330 = vst [vmem:[%s170 + $0x38] sm:$0xff] %v298
      %331 = vst [vmem:[%s170 + $0x40] sm:$0xff] %v299
      %332 = vst [vmem:[%s170 + $0x48] sm:$0xff] %v300
      %333 = vst [vmem:[%s170 + $0x50] sm:$0xff] %v301
      %334 = vst [vmem:[%s170 + $0x58] sm:$0xff] %v302
      %335 = vst [vmem:[%s170 + $0x60] sm:$0xff] %v303
      %336 = vst [vmem:[%s170 + $0x68] sm:$0xff] %v304
      %337 = vst [vmem:[%s170 + $0x70] sm:$0xff] %v305
      %338 = vst [vmem:[%s170 + $0x78] sm:$0xff] %v306
      %339 = vst [vmem:[%s170 + $0x80] sm:$0xff] %v307
      %340 = vst [vmem:[%s170 + $0x88] sm:$0xff] %v308
      %341 = vst [vmem:[%s170 + $0x90] sm:$0xff] %v309
      %342 = vst [vmem:[%s170 + $0x98] sm:$0xff] %v310
      %343 = vst [vmem:[%s170 + $0xa0] sm:$0xff] %v311
      %344 = vst [vmem:[%s170 + $0xa8] sm:$0xff] %v312
      %345 = vst [vmem:[%s170 + $0xb0] sm:$0xff] %v313
      %346 = vst [vmem:[%s170 + $0xb8] sm:$0xff] %v314
      %347 = vst [vmem:[%s170 + $0xc0] sm:$0xff] %v315
      %348 = vst [vmem:[%s170 + $0xc8] sm:$0xff] %v316
      %349 = vst [vmem:[%s170 + $0xd0] sm:$0xff] %v317
      %350 = vst [vmem:[%s170 + $0xd8] sm:$0xff] %v318
      %351 = vst [vmem:[%s170 + $0xe0] sm:$0xff] %v319
      %352 = vst [vmem:[%s170 + $0xe8] sm:$0xff] %v320
      %353 = vst [vmem:[%s170 + $0xf0] sm:$0xff] %v321
      %354 = vst [vmem:[%s170 + $0xf8] sm:$0xff] %v322
      %p355 = scmp.lt.s32.totalorder %s14, 1
      %s356 = scalar_select %p355, %s14, 1
      %s357 = smul.addr %s356, 32
      %s358 = smul.addr %s357, 8
      %s359 = scalar_lea.vmem %s3, %s358
      // Predicated region
      $region33: #{cba_forward.3} parent=31 // pred_check
        %p360 = pneg %p100
      $region34: #{cba_forward.3} parent=31 // pred_check_branch
        %362 = sbr.rel (%p360) target = $region36
      $region35: #{cba_forward.3} parent=31 // pred_region
        _
      $region36: #{cba_forward.3} parent=31 // pred_fallthru
        _
    $region32: #{cba_forward.3} parent=5 // pred_fallthru
      _
    %p363 = scmp.le.s32.totalorder 2, %s9
    // Predicated region
    $region37: #{cba_forward.3} parent=5 // pred_check
      %p364 = pneg %p363
    $region38: #{cba_forward.3} parent=5 // pred_check_branch
      %366 = sbr.rel (%p364) target = $region40
    $region39: #{cba_forward.3} parent=5 // pred_region
      %s367 = ssub.s32 %s9, 2
      // Predicated region
      $region41: #{cba_forward.3} parent=39 // pred_check
        %p368 = pneg %p106
      $region42: #{cba_forward.3} parent=39 // pred_check_branch
        %370 = sbr.rel (%p368) target = $region44
      $region43: #{cba_forward.3} parent=39 // pred_region
        %p371 = scmp.lt.s32.totalorder %s15, 1
        %s372 = scalar_select %p371, %s15, 1
        %s373 = smul.addr %s372, 32
        %s374 = smul.addr %s373, 8
        %s375 = scalar_lea.vmem %s3, %s374
      $region44: #{cba_forward.3} parent=39 // pred_fallthru
        _
    $region40: #{cba_forward.3} parent=5 // pred_fallthru
      _
  $region6: #{cba_forward.3} parent=0 // loop_footer
    %s13 = sadd.s32 1, %s9
  $region7: #{cba_forward.3} parent=0 // loop_footer_branch
    %8 = sbr.rel target = $region3
  $region8: #{cba_forward.3} parent=0 // loop_exit
    _

// kernel: cba_forward.2
$region0: #{cba_forward.2}
  #allocation0 [shape = 'u32[]', space=smem, size = 0x4, offset = 0x4, fixed_abs, tag = 'smem constant byte address 0x4 - core index']
  #allocation1 [shape = 'u32[144,128]{1,0:T(1,128)}', space=vmem, size = 0x12000, scoped, tag = 'internal scratch']
  %s0 = inlined_call_operand.vmem [shape: bf16[2,208,48], index: 0, kind: input, shape index: {}]
  %s1 = inlined_call_operand.vmem [shape: bf16[5,5,48,256], index: 1, kind: input, shape index: {}]
  %s2 = inlined_call_operand.vmem [shape: f32[1,256], index: 2, kind: input, shape index: {}]
  %s3 = inlined_call_operand.vmem [shape: f32[128,1], index: 3, kind: input, shape index: {}]
  %s4 = inlined_call_operand.vmem [shape: f32[2,128,256], index: 4, kind: output, shape index: {0}]
  %s5 = inlined_call_operand.vmem [shape: f32[2,2,256], index: 5, kind: output, shape index: {1}]
  %6 = xla_tuple %s4, %s5
  %s7 = sld [smem:[#allocation0]]
  $region65: #{cba_forward.2} parent=0
    _
  %s9 = ssub.s32 1, %s7
  %s10 = scalar_select 0, %s9, %s7
  loop: start=0, step=1, limit=12
  $region2: #{cba_forward.2} parent=0 // loop_pre_header
    _
  $region3: #{cba_forward.2} parent=0 // loop_header
    %s12 = sphi 0, %s16
    %p13 = scmp.ge.s32.totalorder %s12, 12
    %s19 = sphi 0, %s31
    %s20 = sphi 0, %s27
    %s21 = sphi 0, %s19
    %s22 = sphi 0, %s20
    %s23 = sphi 0, %s21
    %s24 = sphi 0, %s22
    %s34 = sphi 0, %s36
    %s37 = sphi 0, %s34
    %s38 = sphi 0, %s37
    %s54 = sphi 0, %s38
    %s60 = sphi 0, %s62
    %s63 = sphi 0, %s60
    %s64 = sphi 0, %s63
    %s80 = sphi 0, %s64
    %s84 = sphi 0, %s84
    %s86 = sphi 0, %s84
    %s87 = sphi 0, %s86
    %s101 = sphi 0, %s87
    %s105 = sphi 0, %s105
    %s107 = sphi 0, %s105
    %s108 = sphi 0, %s107
    %s122 = sphi 0, %s108
    %s128 = sphi 0, %s130
    %s131 = sphi 0, %s128
    %s132 = sphi 0, %s131
    %s148 = sphi 0, %s132
    %s154 = sphi 0, %s156
    %s157 = sphi 0, %s154
    %s158 = sphi 0, %s157
    %s174 = sphi 0, %s158
  $region4: #{cba_forward.2} parent=0 // loop_header_branch
    %15 = sbr.rel (%p13) target = $region8
  $region5: #{cba_forward.2} parent=0 // loop_body
    %s17 = ssub.s32 %s12, 1
    %s18 = ssub.s32 %s12, 2
    %s25 = sadd.s32 1, %s20
    %p26 = scmp.ge.s32.totalorder %s25, 5
    %s27 = scalar_select %p26, 0, %s25
    %s28 = sadd.s32 1, %s19
    %s29 = scalar_select %p26, %s28, %s19
    %p30 = scmp.ge.s32.totalorder %s29, 2
    %s31 = scalar_select %p30, 0, %s29
    %s32 = ssub.s32 %s19, %s31
    %p33 = scmp.eq.s32.totalorder %s32, 0
    %s35 = sadd.s32 %s34, 1
    %s36 = scalar_select %p33, %s34, %s35
    %p39 = pneg %p33
    %p40 = scmp.eq.s32.totalorder %s12, 9
    %p41 = por %p39, %p40
    %p42 = scmp.ne.s32.totalorder %s34, %s37
    %p43 = scmp.eq.s32.totalorder %s12, 0
    %p44 = por %p42, %p43
    %p45 = scmp.ne.s32.totalorder %s34, %s37
    %p46 = scmp.eq.s32.totalorder %s17, 9
    %p47 = por %p45, %p46
    %p48 = scmp.ne.s32.totalorder %s37, %s38
    %p49 = scmp.eq.s32.totalorder %s17, 0
    %p50 = por %p48, %p49
    %p51 = scmp.ne.s32.totalorder %s37, %s38
    %p52 = scmp.eq.s32.totalorder %s18, 9
    %p53 = por %p51, %p52
    %p55 = scmp.ne.s32.totalorder %s38, %s54
    %p56 = scmp.eq.s32.totalorder %s18, 0
    %p57 = por %p55, %p56
    %s58 = ssub.s32 %s20, %s27
    %p59 = scmp.eq.s32.totalorder %s58, 0
    %s61 = sadd.s32 %s60, 1
    %s62 = scalar_select %p59, %s60, %s61
    %p65 = pneg %p59
    %p66 = scmp.eq.s32.totalorder %s12, 9
    %p67 = por %p65, %p66
    %p68 = scmp.ne.s32.totalorder %s60, %s63
    %p69 = scmp.eq.s32.totalorder %s12, 0
    %p70 = por %p68, %p69
    %p71 = scmp.ne.s32.totalorder %s60, %s63
    %p72 = scmp.eq.s32.totalorder %s17, 9
    %p73 = por %p71, %p72
    %p74 = scmp.ne.s32.totalorder %s63, %s64
    %p75 = scmp.eq.s32.totalorder %s17, 0
    %p76 = por %p74, %p75
    %p77 = scmp.ne.s32.totalorder %s63, %s64
    %p78 = scmp.eq.s32.totalorder %s18, 9
    %p79 = por %p77, %p78
    %p81 = scmp.ne.s32.totalorder %s64, %s80
    %p82 = scmp.eq.s32.totalorder %s18, 0
    %p83 = por %p81, %p82
    %s85 = sadd.s32 %s84, 1
    %p88 = scmp.eq.s32.totalorder %s12, 9
    %p89 = scmp.ne.s32.totalorder %s84, %s86
    %p90 = scmp.eq.s32.totalorder %s12, 0
    %p91 = por %p89, %p90
    %p92 = scmp.ne.s32.totalorder %s84, %s86
    %p93 = scmp.eq.s32.totalorder %s17, 9
    %p94 = por %p92, %p93
    %p95 = scmp.ne.s32.totalorder %s86, %s87
    %p96 = scmp.eq.s32.totalorder %s17, 0
    %p97 = por %p95, %p96
    %p98 = scmp.ne.s32.totalorder %s86, %s87
    %p99 = scmp.eq.s32.totalorder %s18, 9
    %p100 = por %p98, %p99
    %p102 = scmp.ne.s32.totalorder %s87, %s101
    %p103 = scmp.eq.s32.totalorder %s18, 0
    %p104 = por %p102, %p103
    %s106 = sadd.s32 %s105, 1
    %p109 = scmp.eq.s32.totalorder %s12, 9
    %p110 = scmp.ne.s32.totalorder %s105, %s107
    %p111 = scmp.eq.s32.totalorder %s12, 0
    %p112 = por %p110, %p111
    %p113 = scmp.ne.s32.totalorder %s105, %s107
    %p114 = scmp.eq.s32.totalorder %s17, 9
    %p115 = por %p113, %p114
    %p116 = scmp.ne.s32.totalorder %s107, %s108
    %p117 = scmp.eq.s32.totalorder %s17, 0
    %p118 = por %p116, %p117
    %p119 = scmp.ne.s32.totalorder %s107, %s108
    %p120 = scmp.eq.s32.totalorder %s18, 9
    %p121 = por %p119, %p120
    %p123 = scmp.ne.s32.totalorder %s108, %s122
    %p124 = scmp.eq.s32.totalorder %s18, 0
    %p125 = por %p123, %p124
    %s126 = ssub.s32 %s19, %s31
    %p127 = scmp.eq.s32.totalorder %s126, 0
    %s129 = sadd.s32 %s128, 1
    %s130 = scalar_select %p127, %s128, %s129
    %p133 = pneg %p127
    %p134 = scmp.eq.s32.totalorder %s12, 9
    %p135 = por %p133, %p134
    %p136 = scmp.ne.s32.totalorder %s128, %s131
    %p137 = scmp.eq.s32.totalorder %s12, 0
    %p138 = por %p136, %p137
    %p139 = scmp.ne.s32.totalorder %s128, %s131
    %p140 = scmp.eq.s32.totalorder %s17, 9
    %p141 = por %p139, %p140
    %p142 = scmp.ne.s32.totalorder %s131, %s132
    %p143 = scmp.eq.s32.totalorder %s17, 0
    %p144 = por %p142, %p143
    %p145 = scmp.ne.s32.totalorder %s131, %s132
    %p146 = scmp.eq.s32.totalorder %s18, 9
    %p147 = por %p145, %p146
    %p149 = scmp.ne.s32.totalorder %s132, %s148
    %p150 = scmp.eq.s32.totalorder %s18, 0
    %p151 = por %p149, %p150
    %s152 = ssub.s32 %s19, %s31
    %p153 = scmp.eq.s32.totalorder %s152, 0
    %s155 = sadd.s32 %s154, 1
    %s156 = scalar_select %p153, %s154, %s155
    %p159 = pneg %p153
    %p160 = scmp.eq.s32.totalorder %s12, 9
    %p161 = por %p159, %p160
    %p162 = scmp.ne.s32.totalorder %s154, %s157
    %p163 = scmp.eq.s32.totalorder %s12, 0
    %p164 = por %p162, %p163
    %p165 = scmp.ne.s32.totalorder %s154, %s157
    %p166 = scmp.eq.s32.totalorder %s17, 9
    %p167 = por %p165, %p166
    %p168 = scmp.ne.s32.totalorder %s157, %s158
    %p169 = scmp.eq.s32.totalorder %s17, 0
    %p170 = por %p168, %p169
    %p171 = scmp.ne.s32.totalorder %s157, %s158
    %p172 = scmp.eq.s32.totalorder %s18, 9
    %p173 = por %p171, %p172
    %p175 = scmp.ne.s32.totalorder %s158, %s174
    %p176 = scmp.eq.s32.totalorder %s18, 0
    %p177 = por %p175, %p176
    %p178 = scmp.le.s32.totalorder 1, %s12
    %p179 = scmp.lt.s32.totalorder %s12, 11
    %p180 = pnand %p178, %p179
    %p181 = pneg %p180
    // Predicated region
    $region9: #{cba_forward.2} parent=5 // pred_check
      _
    $region10: #{cba_forward.2} parent=5 // pred_check_branch
      %183 = sbr.rel (%p180) target = $region12
    $region11: #{cba_forward.2} parent=5 // pred_region
      %s184 = ssub.s32 %s12, 1
      // Predicated region
      $region13: #{cba_forward.2} parent=11 // pred_check
        %p185 = pneg %p97
      $region14: #{cba_forward.2} parent=11 // pred_check_branch
        %187 = sbr.rel (%p185) target = $region16
      $region15: #{cba_forward.2} parent=11 // pred_region
        _
      $region16: #{cba_forward.2} parent=11 // pred_fallthru
        _
      // Predicated region
      $region17: #{cba_forward.2} parent=11 // pred_check
        %p188 = pneg %p118
      $region18: #{cba_forward.2} parent=11 // pred_check_branch
        %190 = sbr.rel (%p188) target = $region20
      $region19: #{cba_forward.2} parent=11 // pred_region
        _
      $region20: #{cba_forward.2} parent=11 // pred_fallthru
        _
    $region12: #{cba_forward.2} parent=5 // pred_fallthru
      _
    %p191 = scmp.lt.s32.totalorder %s12, 10
    // Predicated region
    $region21: #{cba_forward.2} parent=5 // pred_check
      %p192 = pneg %p191
    $region22: #{cba_forward.2} parent=5 // pred_check_branch
      %194 = sbr.rel (%p192) target = $region24
    $region23: #{cba_forward.2} parent=5 // pred_region
      // Predicated region
      $region25: #{cba_forward.2} parent=23 // pred_check
        %p195 = pneg %p44
      $region26: #{cba_forward.2} parent=23 // pred_check_branch
        %197 = sbr.rel (%p195) target = $region28
      $region27: #{cba_forward.2} parent=23 // pred_region
        %p198 = scmp.lt.s32.totalorder %s19, 1
        %s199 = scalar_select %p198, %s19, 1
        %s200 = smul.addr %s199, 26
        %s201 = smul.addr %s200, 4
        %s202 = scalar_lea.vmem %s0, %s201
      $region28: #{cba_forward.2} parent=23 // pred_fallthru
        _
      // Predicated region
      $region29: #{cba_forward.2} parent=23 // pred_check
        %p203 = pneg %p70
      $region30: #{cba_forward.2} parent=23 // pred_check_branch
        %205 = sbr.rel (%p203) target = $region32
      $region31: #{cba_forward.2} parent=23 // pred_region
        %p206 = scmp.lt.s32.totalorder %s20, 4
        %s207 = scalar_select %p206, %s20, 4
        %s208 = smul.addr %s207, 60
        %s209 = smul.addr %s208, 4
        %s210 = scalar_lea.vmem %s1, %s209
      $region32: #{cba_forward.2} parent=23 // pred_fallthru
        _
    $region24: #{cba_forward.2} parent=5 // pred_fallthru
      _
    %p211 = scmp.le.s32.totalorder 1, %s12
    %p212 = scmp.lt.s32.totalorder %s12, 11
    %p213 = pnand %p211, %p212
    %p214 = pneg %p213
    // Predicated region
    $region33: #{cba_forward.2} parent=5 // pred_check
      _
    $region34: #{cba_forward.2} parent=5 // pred_check_branch
      %216 = sbr.rel (%p213) target = $region36
    $region35: #{cba_forward.2} parent=5 // pred_region
      %s217 = ssub.s32 %s12, 1
      %p218 = scmp.lt.s32.totalorder %s21, 1
      %s219 = scalar_select %p218, %s21, 1
      %s220 = smul.addr %s219, 26
      %s221 = smul.addr %s220, 4
      %s222 = scalar_lea.vmem %s0, %s221
      %p223 = pneg %p50
      %p224 = pneg %p47
      %p225 = scmp.lt.s32.totalorder %s22, 4
      %s226 = scalar_select %p225, %s22, 4
      %s227 = smul.addr %s226, 60
      %s228 = smul.addr %s227, 4
      %s229 = scalar_lea.vmem %s1, %s228
      %p230 = pneg %p76
      %p231 = pneg %p73
      %p232 = pneg %p97
      %p233 = pneg %p94
      %p234 = pneg %p118
      %p235 = pneg %p115
      %p236 = pneg %p144
      %p237 = pneg %p141
      %p238 = scmp.lt.s32.totalorder %s21, 1
      %s239 = scalar_select %p238, %s21, 1
      %s240 = smul.addr %s239, 32
      %s241 = smul.addr %s240, 8
      %s242 = scalar_lea.vmem %s4, %s241
      %p243 = pneg %p170
      %p244 = pneg %p167
      %p245 = scmp.lt.s32.totalorder %s21, 1
      %s246 = scalar_select %p245, %s21, 1
      %s247 = smul.addr %s246, 2
      %s248 = smul.addr %s247, 2
      %s249 = scalar_lea.vmem %s5, %s248
      %p250 = scmp.lt.s32.totalorder %s21, 1
      %s251 = scalar_select %p250, %s21, 1
      %s252 = smul.addr %s251, 26
      %s253 = smul.addr %s252, 4
      %s254 = scalar_lea.vmem %s0, %s253
      %p255 = scmp.lt.s32.totalorder %s22, 4
      %s256 = scalar_select %p255, %s22, 4
      %s257 = smul.addr %s256, 60
      %s258 = smul.addr %s257, 4
      %s259 = scalar_lea.vmem %s1, %s258
      %p260 = scmp.lt.s32.totalorder %s21, 1
      %s261 = scalar_select %p260, %s21, 1
      %s262 = smul.addr %s261, 32
      %s263 = smul.addr %s262, 8
      %s264 = scalar_lea.vmem %s4, %s263
      %p265 = scmp.lt.s32.totalorder %s21, 1
      %s266 = scalar_select %p265, %s21, 1
      %s267 = smul.addr %s266, 2
      %s268 = smul.addr %s267, 2
      %s269 = scalar_lea.vmem %s5, %s268
      %p271 = scmp.eq.s32.totalorder %s22, 0
      // Predicated region
      $region37: #{cba_forward.2} parent=35 // pred_check
        %p272 = pneg %p271
      $region38: #{cba_forward.2} parent=35 // pred_check_branch
        %274 = sbr.rel (%p272) target = $region40
      $region39: #{cba_forward.2} parent=35 // pred_region
        %v275 = vld [vmem:[%s2] sm:$0x3]
        %v277 = vlaneseq
        %v278 = vshrl.u32 %v277, 7
        %v279 = vsub.s32 0, %v278
        %v280 = vrot.slane %v275, %v279
        %v281 = vlaneseq
        %v282 = vshrl.u32 %v281, 7
        %v283 = vsub.s32 1, %v282
        %v284 = vrot.slane %v275, %v283
        %287 = vst [vmem:[%s264] sm:$0xff] %v280
        %288 = vst [vmem:[%s264 + $0x8] sm:$0xff] %v284
        %289 = vst [vmem:[%s264 + $0x10] sm:$0xff] %v280
        %290 = vst [vmem:[%s264 + $0x18] sm:$0xff] %v284
        %291 = vst [vmem:[%s264 + $0x20] sm:$0xff] %v280
        %292 = vst [vmem:[%s264 + $0x28] sm:$0xff] %v284
        %293 = vst [vmem:[%s264 + $0x30] sm:$0xff] %v280
        %294 = vst [vmem:[%s264 + $0x38] sm:$0xff] %v284
        %295 = vst [vmem:[%s264 + $0x40] sm:$0xff] %v280
        %296 = vst [vmem:[%s264 + $0x48] sm:$0xff] %v284
        %297 = vst [vmem:[%s264 + $0x50] sm:$0xff] %v280
        %298 = vst [vmem:[%s264 + $0x58] sm:$0xff] %v284
        %299 = vst [vmem:[%s264 + $0x60] sm:$0xff] %v280
        %300 = vst [vmem:[%s264 + $0x68] sm:$0xff] %v284
        %301 = vst [vmem:[%s264 + $0x70] sm:$0xff] %v280
        %302 = vst [vmem:[%s264 + $0x78] sm:$0xff] %v284
        %303 = vst [vmem:[%s264 + $0x80] sm:$0xff] %v280
        %304 = vst [vmem:[%s264 + $0x88] sm:$0xff] %v284
        %305 = vst [vmem:[%s264 + $0x90] sm:$0xff] %v280
        %306 = vst [vmem:[%s264 + $0x98] sm:$0xff] %v284
        %307 = vst [vmem:[%s264 + $0xa0] sm:$0xff] %v280
        %308 = vst [vmem:[%s264 + $0xa8] sm:$0xff] %v284
        %309 = vst [vmem:[%s264 + $0xb0] sm:$0xff] %v280
        %310 = vst [vmem:[%s264 + $0xb8] sm:$0xff] %v284
        %311 = vst [vmem:[%s264 + $0xc0] sm:$0xff] %v280
        %312 = vst [vmem:[%s264 + $0xc8] sm:$0xff] %v284
        %313 = vst [vmem:[%s264 + $0xd0] sm:$0xff] %v280
        %314 = vst [vmem:[%s264 + $0xd8] sm:$0xff] %v284
        %315 = vst [vmem:[%s264 + $0xe0] sm:$0xff] %v280
        %316 = vst [vmem:[%s264 + $0xe8] sm:$0xff] %v284
        %317 = vst [vmem:[%s264 + $0xf0] sm:$0xff] %v280
        %318 = vst [vmem:[%s264 + $0xf8] sm:$0xff] %v284
      $region40: #{cba_forward.2} parent=35 // pred_fallthru
        _
      %s319 = smul.u32 %s22, 16
      %s320 = sshra.s32 %s319, 3
      %s321 = sand.u32 %s319, 7
      %s322 = smul.addr %s320, 4
      %s323 = scalar_lea.vmem %s254, %s322
      %v324 = vld [vmem:[%s323] sm:$0xf]
      %v325 = vld [vmem:[%s323 + $0x4] sm:$0xf]
      %v326 = vld [vmem:[%s323 + $0x8] sm:$0xf]
      %v327 = vld [vmem:[%s323 + $0xc] sm:$0xf]
      %v328 = vld [vmem:[%s323 + $0x10] sm:$0xf]
      %v329 = vld [vmem:[%s323 + $0x14] sm:$0xf]
      %v330 = vld [vmem:[%s323 + $0x18] sm:$0xf]
      %v331 = vld [vmem:[%s323 + $0x1c] sm:$0xf]
      %v332 = vld [vmem:[%s323 + $0x20] sm:$0xf]
      %v333 = vld [vmem:[%s323 + $0x24] sm:$0xf]
      %v334 = vld [vmem:[%s323 + $0x28] sm:$0xf]
      %v335 = vld [vmem:[%s323 + $0x2c] sm:$0xf]
      %v336 = vld [vmem:[%s323 + $0x30] sm:$0xf]
      %v337 = vld [vmem:[%s323 + $0x34] sm:$0xf]
      %v338 = vld [vmem:[%s323 + $0x38] sm:$0xf]
      %v339 = vld [vmem:[%s323 + $0x3c] sm:$0xf]
      %v340 = vld [vmem:[%s323 + $0x40] sm:$0x3]
      %v341 = vld [vmem:[%s264] sm:$0xff]
      %v342 = vld [vmem:[%s264 + $0x8] sm:$0xff]
      %v343 = vld [vmem:[%s264 + $0x10] sm:$0xff]
      %v344 = vld [vmem:[%s264 + $0x18] sm:$0xff]
      %v345 = vld [vmem:[%s264 + $0x20] sm:$0xff]
      %v346 = vld [vmem:[%s264 + $0x28] sm:$0xff]
      %v347 = vld [vmem:[%s264 + $0x30] sm:$0xff]
      %v348 = vld [vmem:[%s264 + $0x38] sm:$0xff]
      %v349 = vld [vmem:[%s264 + $0x40] sm:$0xff]
      %v350 = vld [vmem:[%s264 + $0x48] sm:$0xff]
      %v351 = vld [vmem:[%s264 + $0x50] sm:$0xff]
      %v352 = vld [vmem:[%s264 + $0x58] sm:$0xff]
      %v353 = vld [vmem:[%s264 + $0x60] sm:$0xff]
      %v354 = vld [vmem:[%s264 + $0x68] sm:$0xff]
      %v355 = vld [vmem:[%s264 + $0x70] sm:$0xff]
      %v356 = vld [vmem:[%s264 + $0x78] sm:$0xff]
      %v357 = vld [vmem:[%s264 + $0x80] sm:$0xff]
      %v358 = vld [vmem:[%s264 + $0x88] sm:$0xff]
      %v359 = vld [vmem:[%s264 + $0x90] sm:$0xff]
      %v360 = vld [vmem:[%s264 + $0x98] sm:$0xff]
      %v361 = vld [vmem:[%s264 + $0xa0] sm:$0xff]
      %v362 = vld [vmem:[%s264 + $0xa8] sm:$0xff]
      %v363 = vld [vmem:[%s264 + $0xb0] sm:$0xff]
      %v364 = vld [vmem:[%s264 + $0xb8] sm:$0xff]
      %v365 = vld [vmem:[%s264 + $0xc0] sm:$0xff]
      %v366 = vld [vmem:[%s264 + $0xc8] sm:$0xff]
      %v367 = vld [vmem:[%s264 + $0xd0] sm:$0xff]
      %v368 = vld [vmem:[%s264 + $0xd8] sm:$0xff]
      %v369 = vld [vmem:[%s264 + $0xe0] sm:$0xff]
      %v370 = vld [vmem:[%s264 + $0xe8] sm:$0xff]
      %v371 = vld [vmem:[%s264 + $0xf0] sm:$0xff]
      %v372 = vld [vmem:[%s264 + $0xf8] sm:$0xff]
      %v373 = vld [vmem:[%s259] sm:$0xff]
      %v374 = vld [vmem:[%s259 + $0x8] sm:$0xff]
      %v375 = vld [vmem:[%s259 + $0x10] sm:$0xff]
      %v376 = vld [vmem:[%s259 + $0x18] sm:$0xff]
      %v377 = vld [vmem:[%s259 + $0x20] sm:$0xff]
      %v378 = vld [vmem:[%s259 + $0x28] sm:$0xff]
      %v395 = vunpack.c.l.b16 %v324
      %v396 = vunpack.c.l.b16 %v325
      %v397 = vunpack.c.l.b16 %v326
      %v398 = vunpack.c.l.b16 %v327
      %v399 = vunpack.c.l.b16 %v328
      %v400 = vunpack.c.l.b16 %v329
      %v401 = vunpack.c.l.b16 %v330
      %v402 = vunpack.c.l.b16 %v331
      %v403 = vunpack.c.l.b16 %v332
      %v404 = vunpack.c.l.b16 %v333
      %v405 = vunpack.c.l.b16 %v334
      %v406 = vunpack.c.l.b16 %v335
      %v407 = vunpack.c.l.b16 %v336
      %v408 = vunpack.c.l.b16 %v337
      %v409 = vunpack.c.l.b16 %v338
      %v410 = vunpack.c.l.b16 %v339
      %v411 = vpack.c.b16 %v396, %v395
      %v412 = vpack.c.b16 %v398, %v397
      %v413 = vpack.c.b16 %v400, %v399
      %v414 = vpack.c.b16 %v402, %v401
      %v415 = vpack.c.b16 %v404, %v403
      %v416 = vpack.c.b16 %v406, %v405
      %v417 = vpack.c.b16 %v408, %v407
      %v418 = vpack.c.b16 %v410, %v409
      %v425 = vunpack.c.l.b16 %v373
      %v426 = vunpack.c.h.b16 %v373
      %v427 = vunpack.c.l.b16 %v374
      %v428 = vunpack.c.h.b16 %v374
      %v429 = vunpack.c.l.b16 %v375
      %v430 = vunpack.c.h.b16 %v375
      %v431 = vunpack.c.l.b16 %v376
      %v432 = vunpack.c.h.b16 %v376
      %v433 = vunpack.c.l.b16 %v377
      %v434 = vunpack.c.h.b16 %v377
      %v435 = vunpack.c.l.b16 %v378
      %v436 = vunpack.c.h.b16 %v378
      %v437 = vpack.c.b16 %v427, %v425
      %v438 = vpack.c.b16 %v428, %v426
      %v439 = vpack.c.b16 %v431, %v429
      %v440 = vpack.c.b16 %v432, %v430
      %v441 = vpack.c.b16 %v435, %v433
      %v442 = vpack.c.b16 %v436, %v434
      %vm449 = vcmask 392192
      %v451 = vsel %vm449, %v411, 0
      %v454 = vsel %vm449, %v412, 0
      %v457 = vsel %vm449, %v413, 0
      %v460 = vsel %vm449, %v414, 0
      %v463 = vsel %vm449, %v415, 0
      %v466 = vsel %vm449, %v416, 0
      %v469 = vsel %vm449, %v417, 0
      %v472 = vsel %vm449, %v418, 0
      %474 = vmatprep.subr.bf16.mxu0 %v438
      %475 = vmatpush1.bf16.msra.mxu0 %v437
      %476 = vmatprep.subr.bf16.mxu0 %v440
      %477 = vmatpush1.bf16.msra.mxu0 %v439
      %478 = vmatprep.subr.bf16.mxu0 %v442
      %479 = vmatpush1.bf16.msra.mxu0 %v441
      %480 = vmatprep.subr.bf16.mxu0 0
      %481 = vmatpush1.bf16.msra.mxu0 0
      %482 = vmatprep.subr.bf16.mxu0 0
      %483 = vmatpush1.bf16.msra.mxu0 0
      %484 = vmatprep.subr.bf16.mxu0 0
      %485 = vmatpush1.bf16.msra.mxu0 0
      %486 = vmatprep.subr.bf16.mxu0 0
      %487 = vmatpush1.bf16.msra.mxu0 0
      %488 = vmatprep.subr.bf16.mxu0 0
      %489 = vmatpush1.bf16.msra.mxu0 0
      %490 = vmatprep.subr.bf16.mxu0 0
      %491 = vmatpush1.bf16.msra.mxu0 0
      %492 = vmatprep.subr.bf16.mxu0 0
      %493 = vmatpush1.bf16.msra.mxu0 0
      %494 = vmatprep.subr.bf16.mxu0 0
      %495 = vmatpush1.bf16.msra.mxu0 0
      %496 = vmatprep.subr.bf16.mxu0 0
      %497 = vmatpush1.bf16.msra.mxu0 0
      %498 = vmatprep.subr.bf16.mxu0 0
      %499 = vmatpush1.bf16.msra.mxu0 0
      %500 = vmatprep.subr.bf16.mxu0 0
      %501 = vmatpush1.bf16.msra.mxu0 0
      %502 = vmatprep.subr.bf16.mxu0 0
      %503 = vmatpush1.bf16.msra.mxu0 0
      %504 = vmatprep.subr.bf16.mxu0 0
      %505 = vmatpush1.bf16.msra.mxu0 0
      %506 = vmatprep.mubr.bf16.mxu0 0
      %507 = vmatmul.mubr.bf16.gmra.mrb[0].mxu0 %v451
      %v508 = vpop.f32.mrb[0].mxu0
      %v509 = vadd.f32 0.0, %v508
      %v510 = vpop.f32.mrb[0].mxu0
      %v511 = vadd.f32 0.0, %v510
      %v512 = vpop.f32.mrb[0].mxu0
      %v513 = vadd.f32 0.0, %v512
      %v514 = vpop.f32.mrb[0].mxu0
      %v515 = vadd.f32 0.0, %v514
      %516 = vmatprep.mubr.bf16.mxu0 0
      %517 = vmatmul.mubr.bf16.gmra.mrb[0].mxu0 %v454
      %v518 = vpop.f32.mrb[0].mxu0
      %v519 = vadd.f32 0.0, %v518
      %v520 = vpop.f32.mrb[0].mxu0
      %v521 = vadd.f32 0.0, %v520
      %v522 = vpop.f32.mrb[0].mxu0
      %v523 = vadd.f32 0.0, %v522
      %v524 = vpop.f32.mrb[0].mxu0
      %v525 = vadd.f32 0.0, %v524
      %526 = vmatprep.mubr.bf16.mxu0 0
      %527 = vmatmul.mubr.bf16.gmra.mrb[0].mxu0 %v457
      %v528 = vpop.f32.mrb[0].mxu0
      %v529 = vadd.f32 0.0, %v528
      %v530 = vpop.f32.mrb[0].mxu0
      %v531 = vadd.f32 0.0, %v530
      %v532 = vpop.f32.mrb[0].mxu0
      %v533 = vadd.f32 0.0, %v532
      %v534 = vpop.f32.mrb[0].mxu0
      %v535 = vadd.f32 0.0, %v534
      %536 = vmatprep.mubr.bf16.mxu0 0
      %537 = vmatmul.mubr.bf16.gmra.mrb[0].mxu0 %v460
      %v538 = vpop.f32.mrb[0].mxu0
      %v539 = vadd.f32 0.0, %v538
      %v540 = vpop.f32.mrb[0].mxu0
      %v541 = vadd.f32 0.0, %v540
      %v542 = vpop.f32.mrb[0].mxu0
      %v543 = vadd.f32 0.0, %v542
      %v544 = vpop.f32.mrb[0].mxu0
      %v545 = vadd.f32 0.0, %v544
      %546 = vmatprep.mubr.bf16.mxu0 0
      %547 = vmatmul.mubr.bf16.gmra.mrb[0].mxu0 %v463
      %v548 = vpop.f32.mrb[0].mxu0
      %v549 = vadd.f32 0.0, %v548
      %v550 = vpop.f32.mrb[0].mxu0
      %v551 = vadd.f32 0.0, %v550
      %v552 = vpop.f32.mrb[0].mxu0
      %v553 = vadd.f32 0.0, %v552
      %v554 = vpop.f32.mrb[0].mxu0
      %v555 = vadd.f32 0.0, %v554
      %556 = vmatprep.mubr.bf16.mxu0 0
      %557 = vmatmul.mubr.bf16.gmra.mrb[0].mxu0 %v466
      %v558 = vpop.f32.mrb[0].mxu0
      %v559 = vadd.f32 0.0, %v558
      %v560 = vpop.f32.mrb[0].mxu0
      %v561 = vadd.f32 0.0, %v560
      %v562 = vpop.f32.mrb[0].mxu0
      %v563 = vadd.f32 0.0, %v562
      %v564 = vpop.f32.mrb[0].mxu0
      %v565 = vadd.f32 0.0, %v564
      %566 = vmatprep.mubr.bf16.mxu0 0
      %567 = vmatmul.mubr.bf16.gmra.mrb[0].mxu0 %v469
      %v568 = vpop.f32.mrb[0].mxu0
      %v569 = vadd.f32 0.0, %v568
      %v570 = vpop.f32.mrb[0].mxu0
      %v571 = vadd.f32 0.0, %v570
      %v572 = vpop.f32.mrb[0].mxu0
      %v573 = vadd.f32 0.0, %v572
      %v574 = vpop.f32.mrb[0].mxu0
      %v575 = vadd.f32 0.0, %v574
      %576 = vmatprep.mubr.bf16.mxu0 0
      %577 = vmatmul.mubr.bf16.gmra.mrb[0].mxu0 %v472
      %v578 = vpop.f32.mrb[0].mxu0
      %v579 = vadd.f32 0.0, %v578
      %v580 = vpop.f32.mrb[0].mxu0
      %v581 = vadd.f32 0.0, %v580
      %v582 = vpop.f32.mrb[0].mxu0
      %v583 = vadd.f32 0.0, %v582
      %v584 = vpop.f32.mrb[0].mxu0
      %v585 = vadd.f32 0.0, %v584
      %586 = vdwg.mxu0
      %v587 = vadd.f32 %v341, %v509
      %v588 = vadd.f32 %v342, %v511
      %v589 = vadd.f32 %v343, %v513
      %v590 = vadd.f32 %v344, %v515
      %v591 = vadd.f32 %v345, %v519
      %v592 = vadd.f32 %v346, %v521
      %v593 = vadd.f32 %v347, %v523
      %v594 = vadd.f32 %v348, %v525
      %v595 = vadd.f32 %v349, %v529
      %v596 = vadd.f32 %v350, %v531
      %v597 = vadd.f32 %v351, %v533
      %v598 = vadd.f32 %v352, %v535
      %v599 = vadd.f32 %v353, %v539
      %v600 = vadd.f32 %v354, %v541
      %v601 = vadd.f32 %v355, %v543
      %v602 = vadd.f32 %v356, %v545
      %v603 = vadd.f32 %v357, %v549
      %v604 = vadd.f32 %v358, %v551
      %v605 = vadd.f32 %v359, %v553
      %v606 = vadd.f32 %v360, %v555
      %v607 = vadd.f32 %v361, %v559
      %v608 = vadd.f32 %v362, %v561
      %v609 = vadd.f32 %v363, %v563
      %v610 = vadd.f32 %v364, %v565
      %v611 = vadd.f32 %v365, %v569
      %v612 = vadd.f32 %v366, %v571
      %v613 = vadd.f32 %v367, %v573
      %v614 = vadd.f32 %v368, %v575
      %v615 = vadd.f32 %v369, %v579
      %v616 = vadd.f32 %v370, %v581
      %v617 = vadd.f32 %v371, %v583
      %v618 = vadd.f32 %v372, %v585
      %619 = vst [vmem:[%s264] sm:$0xff] %v587
      %620 = vst [vmem:[%s264 + $0x8] sm:$0xff] %v588
      %621 = vst [vmem:[%s264 + $0x10] sm:$0xff] %v589
      %622 = vst [vmem:[%s264 + $0x18] sm:$0xff] %v590
      %623 = vst [vmem:[%s264 + $0x20] sm:$0xff] %v591
      %624 = vst [vmem:[%s264 + $0x28] sm:$0xff] %v592
      %625 = vst [vmem:[%s264 + $0x30] sm:$0xff] %v593
      %626 = vst [vmem:[%s264 + $0x38] sm:$0xff] %v594
      %627 = vst [vmem:[%s264 + $0x40] sm:$0xff] %v595
      %628 = vst [vmem:[%s264 + $0x48] sm:$0xff] %v596
      %629 = vst [vmem:[%s264 + $0x50] sm:$0xff] %v597
      %630 = vst [vmem:[%s264 + $0x58] sm:$0xff] %v598
      %631 = vst [vmem:[%s264 + $0x60] sm:$0xff] %v599
      %632 = vst [vmem:[%s264 + $0x68] sm:$0xff] %v600
      %633 = vst [vmem:[%s264 + $0x70] sm:$0xff] %v601
      %634 = vst [vmem:[%s264 + $0x78] sm:$0xff] %v602
      %635 = vst [vmem:[%s264 + $0x80] sm:$0xff] %v603
      %636 = vst [vmem:[%s264 + $0x88] sm:$0xff] %v604
      %637 = vst [vmem:[%s264 + $0x90] sm:$0xff] %v605
      %638 = vst [vmem:[%s264 + $0x98] sm:$0xff] %v606
      %639 = vst [vmem:[%s264 + $0xa0] sm:$0xff] %v607
      %640 = vst [vmem:[%s264 + $0xa8] sm:$0xff] %v608
      %641 = vst [vmem:[%s264 + $0xb0] sm:$0xff] %v609
      %642 = vst [vmem:[%s264 + $0xb8] sm:$0xff] %v610
      %643 = vst [vmem:[%s264 + $0xc0] sm:$0xff] %v611
      %644 = vst [vmem:[%s264 + $0xc8] sm:$0xff] %v612
      %645 = vst [vmem:[%s264 + $0xd0] sm:$0xff] %v613
      %646 = vst [vmem:[%s264 + $0xd8] sm:$0xff] %v614
      %647 = vst [vmem:[%s264 + $0xe0] sm:$0xff] %v615
      %648 = vst [vmem:[%s264 + $0xe8] sm:$0xff] %v616
      %649 = vst [vmem:[%s264 + $0xf0] sm:$0xff] %v617
      %650 = vst [vmem:[%s264 + $0xf8] sm:$0xff] %v618
      %v651 = vld [vmem:[%s264] sm:$0xff]
      %v652 = vld [vmem:[%s264 + $0x8] sm:$0xff]
      %v653 = vld [vmem:[%s264 + $0x10] sm:$0xff]
      %v654 = vld [vmem:[%s264 + $0x18] sm:$0xff]
      %v655 = vld [vmem:[%s264 + $0x20] sm:$0xff]
      %v656 = vld [vmem:[%s264 + $0x28] sm:$0xff]
      %v657 = vld [vmem:[%s264 + $0x30] sm:$0xff]
      %v658 = vld [vmem:[%s264 + $0x38] sm:$0xff]
      %v659 = vld [vmem:[%s264 + $0x40] sm:$0xff]
      %v660 = vld [vmem:[%s264 + $0x48] sm:$0xff]
      %v661 = vld [vmem:[%s264 + $0x50] sm:$0xff]
      %v662 = vld [vmem:[%s264 + $0x58] sm:$0xff]
      %v663 = vld [vmem:[%s264 + $0x60] sm:$0xff]
      %v664 = vld [vmem:[%s264 + $0x68] sm:$0xff]
      %v665 = vld [vmem:[%s264 + $0x70] sm:$0xff]
      %v666 = vld [vmem:[%s264 + $0x78] sm:$0xff]
      %v667 = vld [vmem:[%s264 + $0x80] sm:$0xff]
      %v668 = vld [vmem:[%s264 + $0x88] sm:$0xff]
      %v669 = vld [vmem:[%s264 + $0x90] sm:$0xff]
      %v670 = vld [vmem:[%s264 + $0x98] sm:$0xff]
      %v671 = vld [vmem:[%s264 + $0xa0] sm:$0xff]
      %v672 = vld [vmem:[%s264 + $0xa8] sm:$0xff]
      %v673 = vld [vmem:[%s264 + $0xb0] sm:$0xff]
      %v674 = vld [vmem:[%s264 + $0xb8] sm:$0xff]
      %v675 = vld [vmem:[%s264 + $0xc0] sm:$0xff]
      %v676 = vld [vmem:[%s264 + $0xc8] sm:$0xff]
      %v677 = vld [vmem:[%s264 + $0xd0] sm:$0xff]
      %v678 = vld [vmem:[%s264 + $0xd8] sm:$0xff]
      %v679 = vld [vmem:[%s264 + $0xe0] sm:$0xff]
      %v680 = vld [vmem:[%s264 + $0xe8] sm:$0xff]
      %v681 = vld [vmem:[%s264 + $0xf0] sm:$0xff]
      %v682 = vld [vmem:[%s264 + $0xf8] sm:$0xff]
      %s683 = scalar_lea.vmem %s259, 48
      %v684 = vld [vmem:[%s683] sm:$0xff]
      %v685 = vld [vmem:[%s683 + $0x8] sm:$0xff]
      %v686 = vld [vmem:[%s683 + $0x10] sm:$0xff]
      %v687 = vld [vmem:[%s683 + $0x18] sm:$0xff]
      %v688 = vld [vmem:[%s683 + $0x20] sm:$0xff]
      %v689 = vld [vmem:[%s683 + $0x28] sm:$0xff]
      %v691 = vunpack.c.l.b16 %v340
      %v692 = vpack.c.b16 %v691, %v691
      %vm693 = vsmask.f32 7424
      %v694 = vshrl.u32 %v411, 16
      %v696 = vshll.u32 %v411, 16
      %v698 = vrot.slane %v696, 1
      %v699 = vor.u32 %v694, %v698
      %v700 = vshll.u32 %v412, 16
      %v702 = vrot.slane %v700, 1
      %v703 = vsel %vm693, %v699, %v702
      %v704 = vshrl.u32 %v412, 16
      %v706 = vor.u32 %v704, %v702
      %v707 = vshll.u32 %v413, 16
      %v709 = vrot.slane %v707, 1
      %v710 = vsel %vm693, %v706, %v709
      %v711 = vshrl.u32 %v413, 16
      %v713 = vor.u32 %v711, %v709
      %v714 = vshll.u32 %v414, 16
      %v716 = vrot.slane %v714, 1
      %v717 = vsel %vm693, %v713, %v716
      %v718 = vshrl.u32 %v414, 16
      %v720 = vor.u32 %v718, %v716
      %v721 = vshll.u32 %v415, 16
      %v723 = vrot.slane %v721, 1
      %v724 = vsel %vm693, %v720, %v723
      %v725 = vshrl.u32 %v415, 16
      %v727 = vor.u32 %v725, %v723
      %v728 = vshll.u32 %v416, 16
      %v730 = vrot.slane %v728, 1
      %v731 = vsel %vm693, %v727, %v730
      %v732 = vshrl.u32 %v416, 16
      %v734 = vor.u32 %v732, %v730
      %v735 = vshll.u32 %v417, 16
      %v737 = vrot.slane %v735, 1
      %v738 = vsel %vm693, %v734, %v737
      %v739 = vshrl.u32 %v417, 16
      %v741 = vor.u32 %v739, %v737
      %v742 = vshll.u32 %v418, 16
      %v744 = vrot.slane %v742, 1
      %v745 = vsel %vm693, %v741, %v744
      %v746 = vshrl.u32 %v418, 16
      %v748 = vor.u32 %v746, %v744
      %v750 = vshll.u32 %v692, 16
      %v752 = vrot.slane %v750, 1
      %v753 = vsel %vm693, %v748, %v752
      %v760 = vunpack.c.l.b16 %v684
      %v761 = vunpack.c.h.b16 %v684
      %v762 = vunpack.c.l.b16 %v685
      %v763 = vunpack.c.h.b16 %v685
      %v764 = vunpack.c.l.b16 %v686
      %v765 = vunpack.c.h.b16 %v686
      %v766 = vunpack.c.l.b16 %v687
      %v767 = vunpack.c.h.b16 %v687
      %v768 = vunpack.c.l.b16 %v688
      %v769 = vunpack.c.h.b16 %v688
      %v770 = vunpack.c.l.b16 %v689
      %v771 = vunpack.c.h.b16 %v689
      %v772 = vpack.c.b16 %v762, %v760
      %v773 = vpack.c.b16 %v763, %v761
      %v774 = vpack.c.b16 %v766, %v764
      %v775 = vpack.c.b16 %v767, %v765
      %v776 = vpack.c.b16 %v770, %v768
      %v777 = vpack.c.b16 %v771, %v769
      %v785 = vsel %vm449, %v703, 0
      %v788 = vsel %vm449, %v710, 0
      %v791 = vsel %vm449, %v717, 0
      %v794 = vsel %vm449, %v724, 0
      %v797 = vsel %vm449, %v731, 0
      %v800 = vsel %vm449, %v738, 0
      %v803 = vsel %vm449, %v745, 0
      %v806 = vsel %vm449, %v753, 0
      %808 = vmatprep.subr.bf16.mxu0 %v773
      %809 = vmatpush1.bf16.msra.mxu0 %v772
      %810 = vmatprep.subr.bf16.mxu0 %v775
      %811 = vmatpush1.bf16.msra.mxu0 %v774
      %812 = vmatprep.subr.bf16.mxu0 %v777
      %813 = vmatpush1.bf16.msra.mxu0 %v776
      %814 = vmatprep.subr.bf16.mxu0 0
      %815 = vmatpush1.bf16.msra.mxu0 0
      %816 = vmatprep.subr.bf16.mxu0 0
      %817 = vmatpush1.bf16.msra.mxu0 0
      %818 = vmatprep.subr.bf16.mxu0 0
      %819 = vmatpush1.bf16.msra.mxu0 0
      %820 = vmatprep.subr.bf16.mxu0 0
      %821 = vmatpush1.bf16.msra.mxu0 0
      %822 = vmatprep.subr.bf16.mxu0 0
      %823 = vmatpush1.bf16.msra.mxu0 0
      %824 = vmatprep.subr.bf16.mxu0 0
      %825 = vmatpush1.bf16.msra.mxu0 0
      %826 = vmatprep.subr.bf16.mxu0 0
      %827 = vmatpush1.bf16.msra.mxu0 0
      %828 = vmatprep.subr.bf16.mxu0 0
      %829 = vmatpush1.bf16.msra.mxu0 0
      %830 = vmatprep.subr.bf16.mxu0 0
      %831 = vmatpush1.bf16.msra.mxu0 0
      %832 = vmatprep.subr.bf16.mxu0 0
      %833 = vmatpush1.bf16.msra.mxu0 0
      %834 = vmatprep.subr.bf16.mxu0 0
      %835 = vmatpush1.bf16.msra.mxu0 0
      %836 = vmatprep.subr.bf16.mxu0 0
      %837 = vmatpush1.bf16.msra.mxu0 0
      %838 = vmatprep.subr.bf16.mxu0 0
      %839 = vmatpush1.bf16.msra.mxu0 0
      %840 = vmatprep.mubr.bf16.mxu0 0
      %841 = vmatmul.mubr.bf16.gmra.mrb[0].mxu0 %v785
      %v842 = vpop.f32.mrb[0].mxu0
      %v843 = vadd.f32 0.0, %v842
      %v844 = vpop.f32.mrb[0].mxu0
      %v845 = vadd.f32 0.0, %v844
      %v846 = vpop.f32.mrb[0].mxu0
      %v847 = vadd.f32 0.0, %v846
      %v848 = vpop.f32.mrb[0].mxu0
      %v849 = vadd.f32 0.0, %v848
      %850 = vmatprep.mubr.bf16.mxu0 0
      %851 = vmatmul.mubr.bf16.gmra.mrb[0].mxu0 %v788
      %v852 = vpop.f32.mrb[0].mxu0
      %v853 = vadd.f32 0.0, %v852
      %v854 = vpop.f32.mrb[0].mxu0
      %v855 = vadd.f32 0.0, %v854
      %v856 = vpop.f32.mrb[0].mxu0
      %v857 = vadd.f32 0.0, %v856
      %v858 = vpop.f32.mrb[0].mxu0
      %v859 = vadd.f32 0.0, %v858
      %860 = vmatprep.mubr.bf16.mxu0 0
      %861 = vmatmul.mubr.bf16.gmra.mrb[0].mxu0 %v791
      %v862 = vpop.f32.mrb[0].mxu0
      %v863 = vadd.f32 0.0, %v862
      %v864 = vpop.f32.mrb[0].mxu0
      %v865 = vadd.f32 0.0, %v864
      %v866 = vpop.f32.mrb[0].mxu0
      %v867 = vadd.f32 0.0, %v866
      %v868 = vpop.f32.mrb[0].mxu0
      %v869 = vadd.f32 0.0, %v868
      %870 = vmatprep.mubr.bf16.mxu0 0
      %871 = vmatmul.mubr.bf16.gmra.mrb[0].mxu0 %v794
      %v872 = vpop.f32.mrb[0].mxu0
      %v873 = vadd.f32 0.0, %v872
      %v874 = vpop.f32.mrb[0].mxu0
      %v875 = vadd.f32 0.0, %v874
      %v876 = vpop.f32.mrb[0].mxu0
      %v877 = vadd.f32 0.0, %v876
      %v878 = vpop.f32.mrb[0].mxu0
      %v879 = vadd.f32 0.0, %v878
      %880 = vmatprep.mubr.bf16.mxu0 0
      %881 = vmatmul.mubr.bf16.gmra.mrb[0].mxu0 %v797
      %v882 = vpop.f32.mrb[0].mxu0
      %v883 = vadd.f32 0.0, %v882
      %v884 = vpop.f32.mrb[0].mxu0
      %v885 = vadd.f32 0.0, %v884
      %v886 = vpop.f32.mrb[0].mxu0
      %v887 = vadd.f32 0.0, %v886
      %v888 = vpop.f32.mrb[0].mxu0
      %v889 = vadd.f32 0.0, %v888
      %890 = vmatprep.mubr.bf16.mxu0 0
      %891 = vmatmul.mubr.bf16.gmra.mrb[0].mxu0 %v800
      %v892 = vpop.f32.mrb[0].mxu0
      %v893 = vadd.f32 0.0, %v892
      %v894 = vpop.f32.mrb[0].mxu0
      %v895 = vadd.f32 0.0, %v894
      %v896 = vpop.f32.mrb[0].mxu0
      %v897 = vadd.f32 0.0, %v896
      %v898 = vpop.f32.mrb[0].mxu0
      %v899 = vadd.f32 0.0, %v898
      %900 = vmatprep.mubr.bf16.mxu0 0
      %901 = vmatmul.mubr.bf16.gmra.mrb[0].mxu0 %v803
      %v902 = vpop.f32.mrb[0].mxu0
      %v903 = vadd.f32 0.0, %v902
      %v904 = vpop.f32.mrb[0].mxu0
      %v905 = vadd.f32 0.0, %v904
      %v906 = vpop.f32.mrb[0].mxu0
      %v907 = vadd.f32 0.0, %v906
      %v908 = vpop.f32.mrb[0].mxu0
      %v909 = vadd.f32 0.0, %v908
      %910 = vmatprep.mubr.bf16.mxu0 0
      %911 = vmatmul.mubr.bf16.gmra.mrb[0].mxu0 %v806
      %v912 = vpop.f32.mrb[0].mxu0
      %v913 = vadd.f32 0.0, %v912
      %v914 = vpop.f32.mrb[0].mxu0
      %v915 = vadd.f32 0.0, %v914
      %v916 = vpop.f32.mrb[0].mxu0
      %v917 = vadd.f32 0.0, %v916
      %v918 = vpop.f32.mrb[0].mxu0
      %v919 = vadd.f32 0.0, %v918
      %920 = vdwg.mxu0
      %v921 = vadd.f32 %v651, %v843
      %v922 = vadd.f32 %v652, %v845
      %v923 = vadd.f32 %v653, %v847
      %v924 = vadd.f32 %v654, %v849
      %v925 = vadd.f32 %v655, %v853
      %v926 = vadd.f32 %v656, %v855
      %v927 = vadd.f32 %v657, %v857
      %v928 = vadd.f32 %v658, %v859
      %v929 = vadd.f32 %v659, %v863
      %v930 = vadd.f32 %v660, %v865
      %v931 = vadd.f32 %v661, %v867
      %v932 = vadd.f32 %v662, %v869
      %v933 = vadd.f32 %v663, %v873
      %v934 = vadd.f32 %v664, %v875
      %v935 = vadd.f32 %v665, %v877
      %v936 = vadd.f32 %v666, %v879
      %v937 = vadd.f32 %v667, %v883
      %v938 = vadd.f32 %v668, %v885
      %v939 = vadd.f32 %v669, %v887
      %v940 = vadd.f32 %v670, %v889
      %v941 = vadd.f32 %v671, %v893
      %v942 = vadd.f32 %v672, %v895
      %v943 = vadd.f32 %v673, %v897
      %v944 = vadd.f32 %v674, %v899
      %v945 = vadd.f32 %v675, %v903
      %v946 = vadd.f32 %v676, %v905
      %v947 = vadd.f32 %v677, %v907
      %v948 = vadd.f32 %v678, %v909
      %v949 = vadd.f32 %v679, %v913
      %v950 = vadd.f32 %v680, %v915
      %v951 = vadd.f32 %v681, %v917
      %v952 = vadd.f32 %v682, %v919
      %953 = vst [vmem:[%s264] sm:$0xff] %v921
      %954 = vst [vmem:[%s264 + $0x8] sm:$0xff] %v922
      %955 = vst [vmem:[%s264 + $0x10] sm:$0xff] %v923
      %956 = vst [vmem:[%s264 + $0x18] sm:$0xff] %v924
      %957 = vst [vmem:[%s264 + $0x20] sm:$0xff] %v925
      %958 = vst [vmem:[%s264 + $0x28] sm:$0xff] %v926
      %959 = vst [vmem:[%s264 + $0x30] sm:$0xff] %v927
      %960 = vst [vmem:[%s264 + $0x38] sm:$0xff] %v928
      %961 = vst [vmem:[%s264 + $0x40] sm:$0xff] %v929
      %962 = vst [vmem:[%s264 + $0x48] sm:$0xff] %v930
      %963 = vst [vmem:[%s264 + $0x50] sm:$0xff] %v931
      %964 = vst [vmem:[%s264 + $0x58] sm:$0xff] %v932
      %965 = vst [vmem:[%s264 + $0x60] sm:$0xff] %v933
      %966 = vst [vmem:[%s264 + $0x68] sm:$0xff] %v934
      %967 = vst [vmem:[%s264 + $0x70] sm:$0xff] %v935
      %968 = vst [vmem:[%s264 + $0x78] sm:$0xff] %v936
      %969 = vst [vmem:[%s264 + $0x80] sm:$0xff] %v937
      %970 = vst [vmem:[%s264 + $0x88] sm:$0xff] %v938
      %971 = vst [vmem:[%s264 + $0x90] sm:$0xff] %v939
      %972 = vst [vmem:[%s264 + $0x98] sm:$0xff] %v940
      %973 = vst [vmem:[%s264 + $0xa0] sm:$0xff] %v941
      %974 = vst [vmem:[%s264 + $0xa8] sm:$0xff] %v942
      %975 = vst [vmem:[%s264 + $0xb0] sm:$0xff] %v943
      %976 = vst [vmem:[%s264 + $0xb8] sm:$0xff] %v944
      %977 = vst [vmem:[%s264 + $0xc0] sm:$0xff] %v945
      %978 = vst [vmem:[%s264 + $0xc8] sm:$0xff] %v946
      %979 = vst [vmem:[%s264 + $0xd0] sm:$0xff] %v947
      %980 = vst [vmem:[%s264 + $0xd8] sm:$0xff] %v948
      %981 = vst [vmem:[%s264 + $0xe0] sm:$0xff] %v949
      %982 = vst [vmem:[%s264 + $0xe8] sm:$0xff] %v950
      %983 = vst [vmem:[%s264 + $0xf0] sm:$0xff] %v951
      %984 = vst [vmem:[%s264 + $0xf8] sm:$0xff] %v952
      %v985 = vld [vmem:[%s264] sm:$0xff]
      %v986 = vld [vmem:[%s264 + $0x8] sm:$0xff]
      %v987 = vld [vmem:[%s264 + $0x10] sm:$0xff]
      %v988 = vld [vmem:[%s264 + $0x18] sm:$0xff]
      %v989 = vld [vmem:[%s264 + $0x20] sm:$0xff]
      %v990 = vld [vmem:[%s264 + $0x28] sm:$0xff]
      %v991 = vld [vmem:[%s264 + $0x30] sm:$0xff]
      %v992 = vld [vmem:[%s264 + $0x38] sm:$0xff]
      %v993 = vld [vmem:[%s264 + $0x40] sm:$0xff]
      %v994 = vld [vmem:[%s264 + $0x48] sm:$0xff]
      %v995 = vld [vmem:[%s264 + $0x50] sm:$0xff]
      %v996 = vld [vmem:[%s264 + $0x58] sm:$0xff]
      %v997 = vld [vmem:[%s264 + $0x60] sm:$0xff]
      %v998 = vld [vmem:[%s264 + $0x68] sm:$0xff]
      %v999 = vld [vmem:[%s264 + $0x70] sm:$0xff]
      %v1000 = vld [vmem:[%s264 + $0x78] sm:$0xff]
      %v1001 = vld [vmem:[%s264 + $0x80] sm:$0xff]
      %v1002 = vld [vmem:[%s264 + $0x88] sm:$0xff]
      %v1003 = vld [vmem:[%s264 + $0x90] sm:$0xff]
      %v1004 = vld [vmem:[%s264 + $0x98] sm:$0xff]
      %v1005 = vld [vmem:[%s264 + $0xa0] sm:$0xff]
      %v1006 = vld [vmem:[%s264 + $0xa8] sm:$0xff]
      %v1007 = vld [vmem:[%s264 + $0xb0] sm:$0xff]
      %v1008 = vld [vmem:[%s264 + $0xb8] sm:$0xff]
      %v1009 = vld [vmem:[%s264 + $0xc0] sm:$0xff]
      %v1010 = vld [vmem:[%s264 + $0xc8] sm:$0xff]
      %v1011 = vld [vmem:[%s264 + $0xd0] sm:$0xff]
      %v1012 = vld [vmem:[%s264 + $0xd8] sm:$0xff]
      %v1013 = vld [vmem:[%s264 + $0xe0] sm:$0xff]
      %v1014 = vld [vmem:[%s264 + $0xe8] sm:$0xff]
      %v1015 = vld [vmem:[%s264 + $0xf0] sm:$0xff]
      %v1016 = vld [vmem:[%s264 + $0xf8] sm:$0xff]
      %s1017 = scalar_lea.vmem %s259, 96
      %v1018 = vld [vmem:[%s1017] sm:$0xff]
      %v1019 = vld [vmem:[%s1017 + $0x8] sm:$0xff]
      %v1020 = vld [vmem:[%s1017 + $0x10] sm:$0xff]
      %v1021 = vld [vmem:[%s1017 + $0x18] sm:$0xff]
      %v1022 = vld [vmem:[%s1017 + $0x20] sm:$0xff]
      %v1023 = vld [vmem:[%s1017 + $0x28] sm:$0xff]
      %vm1024 = vcmask 1046528
      %v1025 = vrot.slane %v411, 1
      %v1026 = vrot.slane %v412, 1
      %v1027 = vsel %vm1024, %v1025, %v1026
      %v1028 = vrot.slane %v413, 1
      %v1029 = vsel %vm1024, %v1026, %v1028
      %v1030 = vrot.slane %v414, 1
      %v1031 = vsel %vm1024, %v1028, %v1030
      %v1032 = vrot.slane %v415, 1
      %v1033 = vsel %vm1024, %v1030, %v1032
      %v1034 = vrot.slane %v416, 1
      %v1035 = vsel %vm1024, %v1032, %v1034
      %v1036 = vrot.slane %v417, 1
      %v1037 = vsel %vm1024, %v1034, %v1036
      %v1038 = vrot.slane %v418, 1
      %v1039 = vsel %vm1024, %v1036, %v1038
      %v1040 = vrot.slane %v692, 1
      %v1041 = vsel %vm1024, %v1038, %v1040
      %v1048 = vunpack.c.l.b16 %v1018
      %v1049 = vunpack.c.h.b16 %v1018
      %v1050 = vunpack.c.l.b16 %v1019
      %v1051 = vunpack.c.h.b16 %v1019
      %v1052 = vunpack.c.l.b16 %v1020
      %v1053 = vunpack.c.h.b16 %v1020
      %v1054 = vunpack.c.l.b16 %v1021
      %v1055 = vunpack.c.h.b16 %v1021
      %v1056 = vunpack.c.l.b16 %v1022
      %v1057 = vunpack.c.h.b16 %v1022
      %v1058 = vunpack.c.l.b16 %v1023
      %v1059 = vunpack.c.h.b16 %v1023
      %v1060 = vpack.c.b16 %v1050, %v1048
      %v1061 = vpack.c.b16 %v1051, %v1049
      %v1062 = vpack.c.b16 %v1054, %v1052
      %v1063 = vpack.c.b16 %v1055, %v1053
      %v1064 = vpack.c.b16 %v1058, %v1056
      %v1065 = vpack.c.b16 %v1059, %v1057
      %v1073 = vsel %vm449, %v1027, 0
      %v1076 = vsel %vm449, %v1029, 0
      %v1079 = vsel %vm449, %v1031, 0
      %v1082 = vsel %vm449, %v1033, 0
      %v1085 = vsel %vm449, %v1035, 0
      %v1088 = vsel %vm449, %v1037, 0
      %v1091 = vsel %vm449, %v1039, 0
      %v1094 = vsel %vm449, %v1041, 0
      %1096 = vmatprep.subr.bf16.mxu0 %v1061
      %1097 = vmatpush1.bf16.msra.mxu0 %v1060
      %1098 = vmatprep.subr.bf16.mxu0 %v1063
      %1099 = vmatpush1.bf16.msra.mxu0 %v1062
      %1100 = vmatprep.subr.bf16.mxu0 %v1065
      %1101 = vmatpush1.bf16.msra.mxu0 %v1064
      %1102 = vmatprep.subr.bf16.mxu0 0
      %1103 = vmatpush1.bf16.msra.mxu0 0
      %1104 = vmatprep.subr.bf16.mxu0 0
      %1105 = vmatpush1.bf16.msra.mxu0 0
      %1106 = vmatprep.subr.bf16.mxu0 0
      %1107 = vmatpush1.bf16.msra.mxu0 0
      %1108 = vmatprep.subr.bf16.mxu0 0
      %1109 = vmatpush1.bf16.msra.mxu0 0
      %1110 = vmatprep.subr.bf16.mxu0 0
      %1111 = vmatpush1.bf16.msra.mxu0 0
      %1112 = vmatprep.subr.bf16.mxu0 0
      %1113 = vmatpush1.bf16.msra.mxu0 0
      %1114 = vmatprep.subr.bf16.mxu0 0
      %1115 = vmatpush1.bf16.msra.mxu0 0
      %1116 = vmatprep.subr.bf16.mxu0 0
      %1117 = vmatpush1.bf16.msra.mxu0 0
      %1118 = vmatprep.subr.bf16.mxu0 0
      %1119 = vmatpush1.bf16.msra.mxu0 0
      %1120 = vmatprep.subr.bf16.mxu0 0
      %1121 = vmatpush1.bf16.msra.mxu0 0
      %1122 = vmatprep.subr.bf16.mxu0 0
      %1123 = vmatpush1.bf16.msra.mxu0 0
      %1124 = vmatprep.subr.bf16.mxu0 0
      %1125 = vmatpush1.bf16.msra.mxu0 0
      %1126 = vmatprep.subr.bf16.mxu0 0
      %1127 = vmatpush1.bf16.msra.mxu0 0
      %1128 = vmatprep.mubr.bf16.mxu0 0
      %1129 = vmatmul.mubr.bf16.gmra.mrb[0].mxu0 %v1073
      %v1130 = vpop.f32.mrb[0].mxu0
      %v1131 = vadd.f32 0.0, %v1130
      %v1132 = vpop.f32.mrb[0].mxu0
      %v1133 = vadd.f32 0.0, %v1132
      %v1134 = vpop.f32.mrb[0].mxu0
      %v1135 = vadd.f32 0.0, %v1134
      %v1136 = vpop.f32.mrb[0].mxu0
      %v1137 = vadd.f32 0.0, %v1136
      %1138 = vmatprep.mubr.bf16.mxu0 0
      %1139 = vmatmul.mubr.bf16.gmra.mrb[0].mxu0 %v1076
      %v1140 = vpop.f32.mrb[0].mxu0
      %v1141 = vadd.f32 0.0, %v1140
      %v1142 = vpop.f32.mrb[0].mxu0
      %v1143 = vadd.f32 0.0, %v1142
      %v1144 = vpop.f32.mrb[0].mxu0
      %v1145 = vadd.f32 0.0, %v1144
      %v1146 = vpop.f32.mrb[0].mxu0
      %v1147 = vadd.f32 0.0, %v1146
      %1148 = vmatprep.mubr.bf16.mxu0 0
      %1149 = vmatmul.mubr.bf16.gmra.mrb[0].mxu0 %v1079
      %v1150 = vpop.f32.mrb[0].mxu0
      %v1151 = vadd.f32 0.0, %v1150
      %v1152 = vpop.f32.mrb[0].mxu0
      %v1153 = vadd.f32 0.0, %v1152
      %v1154 = vpop.f32.mrb[0].mxu0
      %v1155 = vadd.f32 0.0, %v1154
      %v1156 = vpop.f32.mrb[0].mxu0
      %v1157 = vadd.f32 0.0, %v1156
      %1158 = vmatprep.mubr.bf16.mxu0 0
      %1159 = vmatmul.mubr.bf16.gmra.mrb[0].mxu0 %v1082
      %v1160 = vpop.f32.mrb[0].mxu0
      %v1161 = vadd.f32 0.0, %v1160
      %v1162 = vpop.f32.mrb[0].mxu0
      %v1163 = vadd.f32 0.0, %v1162
      %v1164 = vpop.f32.mrb[0].mxu0
      %v1165 = vadd.f32 0.0, %v1164
      %v1166 = vpop.f32.mrb[0].mxu0
      %v1167 = vadd.f32 0.0, %v1166
      %1168 = vmatprep.mubr.bf16.mxu0 0
      %1169 = vmatmul.mubr.bf16.gmra.mrb[0].mxu0 %v1085
      %v1170 = vpop.f32.mrb[0].mxu0
      %v1171 = vadd.f32 0.0, %v1170
      %v1172 = vpop.f32.mrb[0].mxu0
      %v1173 = vadd.f32 0.0, %v1172
      %v1174 = vpop.f32.mrb[0].mxu0
      %v1175 = vadd.f32 0.0, %v1174
      %v1176 = vpop.f32.mrb[0].mxu0
      %v1177 = vadd.f32 0.0, %v1176
      %1178 = vmatprep.mubr.bf16.mxu0 0
      %1179 = vmatmul.mubr.bf16.gmra.mrb[0].mxu0 %v1088
      %v1180 = vpop.f32.mrb[0].mxu0
      %v1181 = vadd.f32 0.0, %v1180
      %v1182 = vpop.f32.mrb[0].mxu0
      %v1183 = vadd.f32 0.0, %v1182
      %v1184 = vpop.f32.mrb[0].mxu0
      %v1185 = vadd.f32 0.0, %v1184
      %v1186 = vpop.f32.mrb[0].mxu0
      %v1187 = vadd.f32 0.0, %v1186
      %1188 = vmatprep.mubr.bf16.mxu0 0
      %1189 = vmatmul.mubr.bf16.gmra.mrb[0].mxu0 %v1091
      %v1190 = vpop.f32.mrb[0].mxu0
      %v1191 = vadd.f32 0.0, %v1190
      %v1192 = vpop.f32.mrb[0].mxu0
      %v1193 = vadd.f32 0.0, %v1192
      %v1194 = vpop.f32.mrb[0].mxu0
      %v1195 = vadd.f32 0.0, %v1194
      %v1196 = vpop.f32.mrb[0].mxu0
      %v1197 = vadd.f32 0.0, %v1196
      %1198 = vmatprep.mubr.bf16.mxu0 0
      %1199 = vmatmul.mubr.bf16.gmra.mrb[0].mxu0 %v1094
      %v1200 = vpop.f32.mrb[0].mxu0
      %v1201 = vadd.f32 0.0, %v1200
      %v1202 = vpop.f32.mrb[0].mxu0
      %v1203 = vadd.f32 0.0, %v1202
      %v1204 = vpop.f32.mrb[0].mxu0
      %v1205 = vadd.f32 0.0, %v1204
      %v1206 = vpop.f32.mrb[0].mxu0
      %v1207 = vadd.f32 0.0, %v1206
      %1208 = vdwg.mxu0
      %v1209 = vadd.f32 %v985, %v1131
      %v1210 = vadd.f32 %v986, %v1133
      %v1211 = vadd.f32 %v987, %v1135
      %v1212 = vadd.f32 %v988, %v1137
      %v1213 = vadd.f32 %v989, %v1141
      %v1214 = vadd.f32 %v990, %v1143
      %v1215 = vadd.f32 %v991, %v1145
      %v1216 = vadd.f32 %v992, %v1147
      %v1217 = vadd.f32 %v993, %v1151
      %v1218 = vadd.f32 %v994, %v1153
      %v1219 = vadd.f32 %v995, %v1155
      %v1220 = vadd.f32 %v996, %v1157
      %v1221 = vadd.f32 %v997, %v1161
      %v1222 = vadd.f32 %v998, %v1163
      %v1223 = vadd.f32 %v999, %v1165
      %v1224 = vadd.f32 %v1000, %v1167
      %v1225 = vadd.f32 %v1001, %v1171
      %v1226 = vadd.f32 %v1002, %v1173
      %v1227 = vadd.f32 %v1003, %v1175
      %v1228 = vadd.f32 %v1004, %v1177
      %v1229 = vadd.f32 %v1005, %v1181
      %v1230 = vadd.f32 %v1006, %v1183
      %v1231 = vadd.f32 %v1007, %v1185
      %v1232 = vadd.f32 %v1008, %v1187
      %v1233 = vadd.f32 %v1009, %v1191
      %v1234 = vadd.f32 %v1010, %v1193
      %v1235 = vadd.f32 %v1011, %v1195
      %v1236 = vadd.f32 %v1012, %v1197
      %v1237 = vadd.f32 %v1013, %v1201
      %v1238 = vadd.f32 %v1014, %v1203
      %v1239 = vadd.f32 %v1015, %v1205
      %v1240 = vadd.f32 %v1016, %v1207
      %1241 = vst [vmem:[%s264] sm:$0xff] %v1209
      %1242 = vst [vmem:[%s264 + $0x8] sm:$0xff] %v1210
      %1243 = vst [vmem:[%s264 + $0x10] sm:$0xff] %v1211
      %1244 = vst [vmem:[%s264 + $0x18] sm:$0xff] %v1212
      %1245 = vst [vmem:[%s264 + $0x20] sm:$0xff] %v1213
      %1246 = vst [vmem:[%s264 + $0x28] sm:$0xff] %v1214
      %1247 = vst [vmem:[%s264 + $0x30] sm:$0xff] %v1215
      %1248 = vst [vmem:[%s264 + $0x38] sm:$0xff] %v1216
      %1249 = vst [vmem:[%s264 + $0x40] sm:$0xff] %v1217
      %1250 = vst [vmem:[%s264 + $0x48] sm:$0xff] %v1218
      %1251 = vst [vmem:[%s264 + $0x50] sm:$0xff] %v1219
      %1252 = vst [vmem:[%s264 + $0x58] sm:$0xff] %v1220
      %1253 = vst [vmem:[%s264 + $0x60] sm:$0xff] %v1221
      %1254 = vst [vmem:[%s264 + $0x68] sm:$0xff] %v1222
      %1255 = vst [vmem:[%s264 + $0x70] sm:$0xff] %v1223
      %1256 = vst [vmem:[%s264 + $0x78] sm:$0xff] %v1224
      %1257 = vst [vmem:[%s264 + $0x80] sm:$0xff] %v1225
      %1258 = vst [vmem:[%s264 + $0x88] sm:$0xff] %v1226
      %1259 = vst [vmem:[%s264 + $0x90] sm:$0xff] %v1227
      %1260 = vst [vmem:[%s264 + $0x98] sm:$0xff] %v1228
      %1261 = vst [vmem:[%s264 + $0xa0] sm:$0xff] %v1229
      %1262 = vst [vmem:[%s264 + $0xa8] sm:$0xff] %v1230
      %1263 = vst [vmem:[%s264 + $0xb0] sm:$0xff] %v1231
      %1264 = vst [vmem:[%s264 + $0xb8] sm:$0xff] %v1232
      %1265 = vst [vmem:[%s264 + $0xc0] sm:$0xff] %v1233
      %1266 = vst [vmem:[%s264 + $0xc8] sm:$0xff] %v1234
      %1267 = vst [vmem:[%s264 + $0xd0] sm:$0xff] %v1235
      %1268 = vst [vmem:[%s264 + $0xd8] sm:$0xff] %v1236
      %1269 = vst [vmem:[%s264 + $0xe0] sm:$0xff] %v1237
      %1270 = vst [vmem:[%s264 + $0xe8] sm:$0xff] %v1238
      %1271 = vst [vmem:[%s264 + $0xf0] sm:$0xff] %v1239
      %1272 = vst [vmem:[%s264 + $0xf8] sm:$0xff] %v1240
      %v1273 = vld [vmem:[%s264] sm:$0xff]
      %v1274 = vld [vmem:[%s264 + $0x8] sm:$0xff]
      %v1275 = vld [vmem:[%s264 + $0x10] sm:$0xff]
      %v1276 = vld [vmem:[%s264 + $0x18] sm:$0xff]
      %v1277 = vld [vmem:[%s264 + $0x20] sm:$0xff]
      %v1278 = vld [vmem:[%s264 + $0x28] sm:$0xff]
      %v1279 = vld [vmem:[%s264 + $0x30] sm:$0xff]
      %v1280 = vld [vmem:[%s264 + $0x38] sm:$0xff]
      %v1281 = vld [vmem:[%s264 + $0x40] sm:$0xff]
      %v1282 = vld [vmem:[%s264 + $0x48] sm:$0xff]
      %v1283 = vld [vmem:[%s264 + $0x50] sm:$0xff]
      %v1284 = vld [vmem:[%s264 + $0x58] sm:$0xff]
      %v1285 = vld [vmem:[%s264 + $0x60] sm:$0xff]
      %v1286 = vld [vmem:[%s264 + $0x68] sm:$0xff]
      %v1287 = vld [vmem:[%s264 + $0x70] sm:$0xff]
      %v1288 = vld [vmem:[%s264 + $0x78] sm:$0xff]
      %v1289 = vld [vmem:[%s264 + $0x80] sm:$0xff]
      %v1290 = vld [vmem:[%s264 + $0x88] sm:$0xff]
      %v1291 = vld [vmem:[%s264 + $0x90] sm:$0xff]
      %v1292 = vld [vmem:[%s264 + $0x98] sm:$0xff]
      %v1293 = vld [vmem:[%s264 + $0xa0] sm:$0xff]
      %v1294 = vld [vmem:[%s264 + $0xa8] sm:$0xff]
      %v1295 = vld [vmem:[%s264 + $0xb0] sm:$0xff]
      %v1296 = vld [vmem:[%s264 + $0xb8] sm:$0xff]
      %v1297 = vld [vmem:[%s264 + $0xc0] sm:$0xff]
      %v1298 = vld [vmem:[%s264 + $0xc8] sm:$0xff]
      %v1299 = vld [vmem:[%s264 + $0xd0] sm:$0xff]
      %v1300 = vld [vmem:[%s264 + $0xd8] sm:$0xff]
      %v1301 = vld [vmem:[%s264 + $0xe0] sm:$0xff]
      %v1302 = vld [vmem:[%s264 + $0xe8] sm:$0xff]
      %v1303 = vld [vmem:[%s264 + $0xf0] sm:$0xff]
      %v1304 = vld [vmem:[%s264 + $0xf8] sm:$0xff]
      %s1305 = scalar_lea.vmem %s259, 144
      %v1306 = vld [vmem:[%s1305] sm:$0xff]
      %v1307 = vld [vmem:[%s1305 + $0x8] sm:$0xff]
      %v1308 = vld [vmem:[%s1305 + $0x10] sm:$0xff]
      %v1309 = vld [vmem:[%s1305 + $0x18] sm:$0xff]
      %v1310 = vld [vmem:[%s1305 + $0x20] sm:$0xff]
      %v1311 = vld [vmem:[%s1305 + $0x28] sm:$0xff]
      %vm1312 = vsmask.f32 6400
      %v1313 = vrot.slane %v694, 1
      %v1314 = vrot.slane %v696, 2
      %v1315 = vor.u32 %v1313, %v1314
      %v1316 = vrot.slane %v704, 1
      %v1317 = vrot.slane %v700, 2
      %v1318 = vor.u32 %v1316, %v1317
      %v1319 = vsel %vm1312, %v1315, %v1318
      %v1320 = vrot.slane %v711, 1
      %v1321 = vrot.slane %v707, 2
      %v1322 = vor.u32 %v1320, %v1321
      %v1323 = vsel %vm1312, %v1318, %v1322
      %v1324 = vrot.slane %v718, 1
      %v1325 = vrot.slane %v714, 2
      %v1326 = vor.u32 %v1324, %v1325
      %v1327 = vsel %vm1312, %v1322, %v1326
      %v1328 = vrot.slane %v725, 1
      %v1329 = vrot.slane %v721, 2
      %v1330 = vor.u32 %v1328, %v1329
      %v1331 = vsel %vm1312, %v1326, %v1330
      %v1332 = vrot.slane %v732, 1
      %v1333 = vrot.slane %v728, 2
      %v1334 = vor.u32 %v1332, %v1333
      %v1335 = vsel %vm1312, %v1330, %v1334
      %v1336 = vrot.slane %v739, 1
      %v1337 = vrot.slane %v735, 2
      %v1338 = vor.u32 %v1336, %v1337
      %v1339 = vsel %vm1312, %v1334, %v1338
      %v1340 = vrot.slane %v746, 1
      %v1341 = vrot.slane %v742, 2
      %v1342 = vor.u32 %v1340, %v1341
      %v1343 = vsel %vm1312, %v1338, %v1342
      %v1344 = vshrl.u32 %v692, 16
      %v1346 = vrot.slane %v1344, 1
      %v1347 = vrot.slane %v750, 2
      %v1348 = vor.u32 %v1346, %v1347
      %v1349 = vsel %vm1312, %v1342, %v1348
      %v1356 = vunpack.c.l.b16 %v1306
      %v1357 = vunpack.c.h.b16 %v1306
      %v1358 = vunpack.c.l.b16 %v1307
      %v1359 = vunpack.c.h.b16 %v1307
      %v1360 = vunpack.c.l.b16 %v1308
      %v1361 = vunpack.c.h.b16 %v1308
      %v1362 = vunpack.c.l.b16 %v1309
      %v1363 = vunpack.c.h.b16 %v1309
      %v1364 = vunpack.c.l.b16 %v1310
      %v1365 = vunpack.c.h.b16 %v1310
      %v1366 = vunpack.c.l.b16 %v1311
      %v1367 = vunpack.c.h.b16 %v1311
      %v1368 = vpack.c.b16 %v1358, %v1356
      %v1369 = vpack.c.b16 %v1359, %v1357
      %v1370 = vpack.c.b16 %v1362, %v1360
      %v1371 = vpack.c.b16 %v1363, %v1361
      %v1372 = vpack.c.b16 %v1366, %v1364
      %v1373 = vpack.c.b16 %v1367, %v1365
      %v1381 = vsel %vm449, %v1319, 0
      %v1384 = vsel %vm449, %v1323, 0
      %v1387 = vsel %vm449, %v1327, 0
      %v1390 = vsel %vm449, %v1331, 0
      %v1393 = vsel %vm449, %v1335, 0
      %v1396 = vsel %vm449, %v1339, 0
      %v1399 = vsel %vm449, %v1343, 0
      %v1402 = vsel %vm449, %v1349, 0
      %1404 = vmatprep.subr.bf16.mxu0 %v1369
      %1405 = vmatpush1.bf16.msra.mxu0 %v1368
      %1406 = vmatprep.subr.bf16.mxu0 %v1371
      %1407 = vmatpush1.bf16.msra.mxu0 %v1370
      %1408 = vmatprep.subr.bf16.mxu0 %v1373
      %1409 = vmatpush1.bf16.msra.mxu0 %v1372
      %1410 = vmatprep.subr.bf16.mxu0 0
      %1411 = vmatpush1.bf16.msra.mxu0 0
      %1412 = vmatprep.subr.bf16.mxu0 0
      %1413 = vmatpush1.bf16.msra.mxu0 0
      %1414 = vmatprep.subr.bf16.mxu0 0
      %1415 = vmatpush1.bf16.msra.mxu0 0
      %1416 = vmatprep.subr.bf16.mxu0 0
      %1417 = vmatpush1.bf16.msra.mxu0 0
      %1418 = vmatprep.subr.bf16.mxu0 0
      %1419 = vmatpush1.bf16.msra.mxu0 0
      %1420 = vmatprep.subr.bf16.mxu0 0
      %1421 = vmatpush1.bf16.msra.mxu0 0
      %1422 = vmatprep.subr.bf16.mxu0 0
      %1423 = vmatpush1.bf16.msra.mxu0 0
      %1424 = vmatprep.subr.bf16.mxu0 0
      %1425 = vmatpush1.bf16.msra.mxu0 0
      %1426 = vmatprep.subr.bf16.mxu0 0
      %1427 = vmatpush1.bf16.msra.mxu0 0
      %1428 = vmatprep.subr.bf16.mxu0 0
      %1429 = vmatpush1.bf16.msra.mxu0 0
      %1430 = vmatprep.subr.bf16.mxu0 0
      %1431 = vmatpush1.bf16.msra.mxu0 0
      %1432 = vmatprep.subr.bf16.mxu0 0
      %1433 = vmatpush1.bf16.msra.mxu0 0
      %1434 = vmatprep.subr.bf16.mxu0 0
      %1435 = vmatpush1.bf16.msra.mxu0 0
      %1436 = vmatprep.mubr.bf16.mxu0 0
      %1437 = vmatmul.mubr.bf16.gmra.mrb[0].mxu0 %v1381
      %v1438 = vpop.f32.mrb[0].mxu0
      %v1439 = vadd.f32 0.0, %v1438
      %v1440 = vpop.f32.mrb[0].mxu0
      %v1441 = vadd.f32 0.0, %v1440
      %v1442 = vpop.f32.mrb[0].mxu0
      %v1443 = vadd.f32 0.0, %v1442
      %v1444 = vpop.f32.mrb[0].mxu0
      %v1445 = vadd.f32 0.0, %v1444
      %1446 = vmatprep.mubr.bf16.mxu0 0
      %1447 = vmatmul.mubr.bf16.gmra.mrb[0].mxu0 %v1384
      %v1448 = vpop.f32.mrb[0].mxu0
      %v1449 = vadd.f32 0.0, %v1448
      %v1450 = vpop.f32.mrb[0].mxu0
      %v1451 = vadd.f32 0.0, %v1450
      %v1452 = vpop.f32.mrb[0].mxu0
      %v1453 = vadd.f32 0.0, %v1452
      %v1454 = vpop.f32.mrb[0].mxu0
      %v1455 = vadd.f32 0.0, %v1454
      %1456 = vmatprep.mubr.bf16.mxu0 0
      %1457 = vmatmul.mubr.bf16.gmra.mrb[0].mxu0 %v1387
      %v1458 = vpop.f32.mrb[0].mxu0
      %v1459 = vadd.f32 0.0, %v1458
      %v1460 = vpop.f32.mrb[0].mxu0
      %v1461 = vadd.f32 0.0, %v1460
      %v1462 = vpop.f32.mrb[0].mxu0
      %v1463 = vadd.f32 0.0, %v1462
      %v1464 = vpop.f32.mrb[0].mxu0
      %v1465 = vadd.f32 0.0, %v1464
      %1466 = vmatprep.mubr.bf16.mxu0 0
      %1467 = vmatmul.mubr.bf16.gmra.mrb[0].mxu0 %v1390
      %v1468 = vpop.f32.mrb[0].mxu0
      %v1469 = vadd.f32 0.0, %v1468
      %v1470 = vpop.f32.mrb[0].mxu0
      %v1471 = vadd.f32 0.0, %v1470
      %v1472 = vpop.f32.mrb[0].mxu0
      %v1473 = vadd.f32 0.0, %v1472
      %v1474 = vpop.f32.mrb[0].mxu0
      %v1475 = vadd.f32 0.0, %v1474
      %1476 = vmatprep.mubr.bf16.mxu0 0
      %1477 = vmatmul.mubr.bf16.gmra.mrb[0].mxu0 %v1393
      %v1478 = vpop.f32.mrb[0].mxu0
      %v1479 = vadd.f32 0.0, %v1478
      %v1480 = vpop.f32.mrb[0].mxu0
      %v1481 = vadd.f32 0.0, %v1480
      %v1482 = vpop.f32.mrb[0].mxu0
      %v1483 = vadd.f32 0.0, %v1482
      %v1484 = vpop.f32.mrb[0].mxu0
      %v1485 = vadd.f32 0.0, %v1484
      %1486 = vmatprep.mubr.bf16.mxu0 0
      %1487 = vmatmul.mubr.bf16.gmra.mrb[0].mxu0 %v1396
      %v1488 = vpop.f32.mrb[0].mxu0
      %v1489 = vadd.f32 0.0, %v1488
      %v1490 = vpop.f32.mrb[0].mxu0
      %v1491 = vadd.f32 0.0, %v1490
      %v1492 = vpop.f32.mrb[0].mxu0
      %v1493 = vadd.f32 0.0, %v1492
      %v1494 = vpop.f32.mrb[0].mxu0
      %v1495 = vadd.f32 0.0, %v1494
      %1496 = vmatprep.mubr.bf16.mxu0 0
      %1497 = vmatmul.mubr.bf16.gmra.mrb[0].mxu0 %v1399
      %v1498 = vpop.f32.mrb[0].mxu0
      %v1499 = vadd.f32 0.0, %v1498
      %v1500 = vpop.f32.mrb[0].mxu0
      %v1501 = vadd.f32 0.0, %v1500
      %v1502 = vpop.f32.mrb[0].mxu0
      %v1503 = vadd.f32 0.0, %v1502
      %v1504 = vpop.f32.mrb[0].mxu0
      %v1505 = vadd.f32 0.0, %v1504
      %1506 = vmatprep.mubr.bf16.mxu0 0
      %1507 = vmatmul.mubr.bf16.gmra.mrb[0].mxu0 %v1402
      %v1508 = vpop.f32.mrb[0].mxu0
      %v1509 = vadd.f32 0.0, %v1508
      %v1510 = vpop.f32.mrb[0].mxu0
      %v1511 = vadd.f32 0.0, %v1510
      %v1512 = vpop.f32.mrb[0].mxu0
      %v1513 = vadd.f32 0.0, %v1512
      %v1514 = vpop.f32.mrb[0].mxu0
      %v1515 = vadd.f32 0.0, %v1514
      %1516 = vdwg.mxu0
      %v1517 = vadd.f32 %v1273, %v1439
      %v1518 = vadd.f32 %v1274, %v1441
      %v1519 = vadd.f32 %v1275, %v1443
      %v1520 = vadd.f32 %v1276, %v1445
      %v1521 = vadd.f32 %v1277, %v1449
      %v1522 = vadd.f32 %v1278, %v1451
      %v1523 = vadd.f32 %v1279, %v1453
      %v1524 = vadd.f32 %v1280, %v1455
      %v1525 = vadd.f32 %v1281, %v1459
      %v1526 = vadd.f32 %v1282, %v1461
      %v1527 = vadd.f32 %v1283, %v1463
      %v1528 = vadd.f32 %v1284, %v1465
      %v1529 = vadd.f32 %v1285, %v1469
      %v1530 = vadd.f32 %v1286, %v1471
      %v1531 = vadd.f32 %v1287, %v1473
      %v1532 = vadd.f32 %v1288, %v1475
      %v1533 = vadd.f32 %v1289, %v1479
      %v1534 = vadd.f32 %v1290, %v1481
      %v1535 = vadd.f32 %v1291, %v1483
      %v1536 = vadd.f32 %v1292, %v1485
      %v1537 = vadd.f32 %v1293, %v1489
      %v1538 = vadd.f32 %v1294, %v1491
      %v1539 = vadd.f32 %v1295, %v1493
      %v1540 = vadd.f32 %v1296, %v1495
      %v1541 = vadd.f32 %v1297, %v1499
      %v1542 = vadd.f32 %v1298, %v1501
      %v1543 = vadd.f32 %v1299, %v1503
      %v1544 = vadd.f32 %v1300, %v1505
      %v1545 = vadd.f32 %v1301, %v1509
      %v1546 = vadd.f32 %v1302, %v1511
      %v1547 = vadd.f32 %v1303, %v1513
      %v1548 = vadd.f32 %v1304, %v1515
      %1549 = vst [vmem:[%s264] sm:$0xff] %v1517
      %1550 = vst [vmem:[%s264 + $0x8] sm:$0xff] %v1518
      %1551 = vst [vmem:[%s264 + $0x10] sm:$0xff] %v1519
      %1552 = vst [vmem:[%s264 + $0x18] sm:$0xff] %v1520
      %1553 = vst [vmem:[%s264 + $0x20] sm:$0xff] %v1521
      %1554 = vst [vmem:[%s264 + $0x28] sm:$0xff] %v1522
      %1555 = vst [vmem:[%s264 + $0x30] sm:$0xff] %v1523
      %1556 = vst [vmem:[%s264 + $0x38] sm:$0xff] %v1524
      %1557 = vst [vmem:[%s264 + $0x40] sm:$0xff] %v1525
      %1558 = vst [vmem:[%s264 + $0x48] sm:$0xff] %v1526
      %1559 = vst [vmem:[%s264 + $0x50] sm:$0xff] %v1527
      %1560 = vst [vmem:[%s264 + $0x58] sm:$0xff] %v1528
      %1561 = vst [vmem:[%s264 + $0x60] sm:$0xff] %v1529
      %1562 = vst [vmem:[%s264 + $0x68] sm:$0xff] %v1530
      %1563 = vst [vmem:[%s264 + $0x70] sm:$0xff] %v1531
      %1564 = vst [vmem:[%s264 + $0x78] sm:$0xff] %v1532
      %1565 = vst [vmem:[%s264 + $0x80] sm:$0xff] %v1533
      %1566 = vst [vmem:[%s264 + $0x88] sm:$0xff] %v1534
      %1567 = vst [vmem:[%s264 + $0x90] sm:$0xff] %v1535
      %1568 = vst [vmem:[%s264 + $0x98] sm:$0xff] %v1536
      %1569 = vst [vmem:[%s264 + $0xa0] sm:$0xff] %v1537
      %1570 = vst [vmem:[%s264 + $0xa8] sm:$0xff] %v1538
      %1571 = vst [vmem:[%s264 + $0xb0] sm:$0xff] %v1539
      %1572 = vst [vmem:[%s264 + $0xb8] sm:$0xff] %v1540
      %1573 = vst [vmem:[%s264 + $0xc0] sm:$0xff] %v1541
      %1574 = vst [vmem:[%s264 + $0xc8] sm:$0xff] %v1542
      %1575 = vst [vmem:[%s264 + $0xd0] sm:$0xff] %v1543
      %1576 = vst [vmem:[%s264 + $0xd8] sm:$0xff] %v1544
      %1577 = vst [vmem:[%s264 + $0xe0] sm:$0xff] %v1545
      %1578 = vst [vmem:[%s264 + $0xe8] sm:$0xff] %v1546
      %1579 = vst [vmem:[%s264 + $0xf0] sm:$0xff] %v1547
      %1580 = vst [vmem:[%s264 + $0xf8] sm:$0xff] %v1548
      %v1581 = vld [vmem:[%s264] sm:$0xff]
      %v1582 = vld [vmem:[%s264 + $0x8] sm:$0xff]
      %v1583 = vld [vmem:[%s264 + $0x10] sm:$0xff]
      %v1584 = vld [vmem:[%s264 + $0x18] sm:$0xff]
      %v1585 = vld [vmem:[%s264 + $0x20] sm:$0xff]
      %v1586 = vld [vmem:[%s264 + $0x28] sm:$0xff]
      %v1587 = vld [vmem:[%s264 + $0x30] sm:$0xff]
      %v1588 = vld [vmem:[%s264 + $0x38] sm:$0xff]
      %v1589 = vld [vmem:[%s264 + $0x40] sm:$0xff]
      %v1590 = vld [vmem:[%s264 + $0x48] sm:$0xff]
      %v1591 = vld [vmem:[%s264 + $0x50] sm:$0xff]
      %v1592 = vld [vmem:[%s264 + $0x58] sm:$0xff]
      %v1593 = vld [vmem:[%s264 + $0x60] sm:$0xff]
      %v1594 = vld [vmem:[%s264 + $0x68] sm:$0xff]
      %v1595 = vld [vmem:[%s264 + $0x70] sm:$0xff]
      %v1596 = vld [vmem:[%s264 + $0x78] sm:$0xff]
      %v1597 = vld [vmem:[%s264 + $0x80] sm:$0xff]
      %v1598 = vld [vmem:[%s264 + $0x88] sm:$0xff]
      %v1599 = vld [vmem:[%s264 + $0x90] sm:$0xff]
      %v1600 = vld [vmem:[%s264 + $0x98] sm:$0xff]
      %v1601 = vld [vmem:[%s264 + $0xa0] sm:$0xff]
      %v1602 = vld [vmem:[%s264 + $0xa8] sm:$0xff]
      %v1603 = vld [vmem:[%s264 + $0xb0] sm:$0xff]
      %v1604 = vld [vmem:[%s264 + $0xb8] sm:$0xff]
      %v1605 = vld [vmem:[%s264 + $0xc0] sm:$0xff]
      %v1606 = vld [vmem:[%s264 + $0xc8] sm:$0xff]
      %v1607 = vld [vmem:[%s264 + $0xd0] sm:$0xff]
      %v1608 = vld [vmem:[%s264 + $0xd8] sm:$0xff]
      %v1609 = vld [vmem:[%s264 + $0xe0] sm:$0xff]
      %v1610 = vld [vmem:[%s264 + $0xe8] sm:$0xff]
      %v1611 = vld [vmem:[%s264 + $0xf0] sm:$0xff]
      %v1612 = vld [vmem:[%s264 + $0xf8] sm:$0xff]
      %s1613 = scalar_lea.vmem %s259, 192
      %v1614 = vld [vmem:[%s1613] sm:$0xff]
      %v1615 = vld [vmem:[%s1613 + $0x8] sm:$0xff]
      %v1616 = vld [vmem:[%s1613 + $0x10] sm:$0xff]
      %v1617 = vld [vmem:[%s1613 + $0x18] sm:$0xff]
      %v1618 = vld [vmem:[%s1613 + $0x20] sm:$0xff]
      %v1619 = vld [vmem:[%s1613 + $0x28] sm:$0xff]
      %vm1620 = vcmask 1045504
      %v1621 = vrot.slane %v411, 2
      %v1622 = vrot.slane %v412, 2
      %v1623 = vsel %vm1620, %v1621, %v1622
      %v1624 = vrot.slane %v413, 2
      %v1625 = vsel %vm1620, %v1622, %v1624
      %v1626 = vrot.slane %v414, 2
      %v1627 = vsel %vm1620, %v1624, %v1626
      %v1628 = vrot.slane %v415, 2
      %v1629 = vsel %vm1620, %v1626, %v1628
      %v1630 = vrot.slane %v416, 2
      %v1631 = vsel %vm1620, %v1628, %v1630
      %v1632 = vrot.slane %v417, 2
      %v1633 = vsel %vm1620, %v1630, %v1632
      %v1634 = vrot.slane %v418, 2
      %v1635 = vsel %vm1620, %v1632, %v1634
      %v1636 = vrot.slane %v692, 2
      %v1637 = vsel %vm1620, %v1634, %v1636
      %v1644 = vunpack.c.l.b16 %v1614
      %v1645 = vunpack.c.h.b16 %v1614
      %v1646 = vunpack.c.l.b16 %v1615
      %v1647 = vunpack.c.h.b16 %v1615
      %v1648 = vunpack.c.l.b16 %v1616
      %v1649 = vunpack.c.h.b16 %v1616
      %v1650 = vunpack.c.l.b16 %v1617
      %v1651 = vunpack.c.h.b16 %v1617
      %v1652 = vunpack.c.l.b16 %v1618
      %v1653 = vunpack.c.h.b16 %v1618
      %v1654 = vunpack.c.l.b16 %v1619
      %v1655 = vunpack.c.h.b16 %v1619
      %v1656 = vpack.c.b16 %v1646, %v1644
      %v1657 = vpack.c.b16 %v1647, %v1645
      %v1658 = vpack.c.b16 %v1650, %v1648
      %v1659 = vpack.c.b16 %v1651, %v1649
      %v1660 = vpack.c.b16 %v1654, %v1652
      %v1661 = vpack.c.b16 %v1655, %v1653
      %v1669 = vsel %vm449, %v1623, 0
      %v1672 = vsel %vm449, %v1625, 0
      %v1675 = vsel %vm449, %v1627, 0
      %v1678 = vsel %vm449, %v1629, 0
      %v1681 = vsel %vm449, %v1631, 0
      %v1684 = vsel %vm449, %v1633, 0
      %v1687 = vsel %vm449, %v1635, 0
      %v1690 = vsel %vm449, %v1637, 0
      %1692 = vmatprep.subr.bf16.mxu0 %v1657
      %1693 = vmatpush1.bf16.msra.mxu0 %v1656
      %1694 = vmatprep.subr.bf16.mxu0 %v1659
      %1695 = vmatpush1.bf16.msra.mxu0 %v1658
      %1696 = vmatprep.subr.bf16.mxu0 %v1661
      %1697 = vmatpush1.bf16.msra.mxu0 %v1660
      %1698 = vmatprep.subr.bf16.mxu0 0
      %1699 = vmatpush1.bf16.msra.mxu0 0
      %1700 = vmatprep.subr.bf16.mxu0 0
      %1701 = vmatpush1.bf16.msra.mxu0 0
      %1702 = vmatprep.subr.bf16.mxu0 0
      %1703 = vmatpush1.bf16.msra.mxu0 0
      %1704 = vmatprep.subr.bf16.mxu0 0
      %1705 = vmatpush1.bf16.msra.mxu0 0
      %1706 = vmatprep.subr.bf16.mxu0 0
      %1707 = vmatpush1.bf16.msra.mxu0 0
      %1708 = vmatprep.subr.bf16.mxu0 0
      %1709 = vmatpush1.bf16.msra.mxu0 0
      %1710 = vmatprep.subr.bf16.mxu0 0
      %1711 = vmatpush1.bf16.msra.mxu0 0
      %1712 = vmatprep.subr.bf16.mxu0 0
      %1713 = vmatpush1.bf16.msra.mxu0 0
      %1714 = vmatprep.subr.bf16.mxu0 0
      %1715 = vmatpush1.bf16.msra.mxu0 0
      %1716 = vmatprep.subr.bf16.mxu0 0
      %1717 = vmatpush1.bf16.msra.mxu0 0
      %1718 = vmatprep.subr.bf16.mxu0 0
      %1719 = vmatpush1.bf16.msra.mxu0 0
      %1720 = vmatprep.subr.bf16.mxu0 0
      %1721 = vmatpush1.bf16.msra.mxu0 0
      %1722 = vmatprep.subr.bf16.mxu0 0
      %1723 = vmatpush1.bf16.msra.mxu0 0
      %1724 = vmatprep.mubr.bf16.mxu0 0
      %1725 = vmatmul.mubr.bf16.gmra.mrb[0].mxu0 %v1669
      %v1726 = vpop.f32.mrb[0].mxu0
      %v1727 = vadd.f32 0.0, %v1726
      %v1728 = vpop.f32.mrb[0].mxu0
      %v1729 = vadd.f32 0.0, %v1728
      %v1730 = vpop.f32.mrb[0].mxu0
      %v1731 = vadd.f32 0.0, %v1730
      %v1732 = vpop.f32.mrb[0].mxu0
      %v1733 = vadd.f32 0.0, %v1732
      %1734 = vmatprep.mubr.bf16.mxu0 0
      %1735 = vmatmul.mubr.bf16.gmra.mrb[0].mxu0 %v1672
      %v1736 = vpop.f32.mrb[0].mxu0
      %v1737 = vadd.f32 0.0, %v1736
      %v1738 = vpop.f32.mrb[0].mxu0
      %v1739 = vadd.f32 0.0, %v1738
      %v1740 = vpop.f32.mrb[0].mxu0
      %v1741 = vadd.f32 0.0, %v1740
      %v1742 = vpop.f32.mrb[0].mxu0
      %v1743 = vadd.f32 0.0, %v1742
      %1744 = vmatprep.mubr.bf16.mxu0 0
      %1745 = vmatmul.mubr.bf16.gmra.mrb[0].mxu0 %v1675
      %v1746 = vpop.f32.mrb[0].mxu0
      %v1747 = vadd.f32 0.0, %v1746
      %v1748 = vpop.f32.mrb[0].mxu0
      %v1749 = vadd.f32 0.0, %v1748
      %v1750 = vpop.f32.mrb[0].mxu0
      %v1751 = vadd.f32 0.0, %v1750
      %v1752 = vpop.f32.mrb[0].mxu0
      %v1753 = vadd.f32 0.0, %v1752
      %1754 = vmatprep.mubr.bf16.mxu0 0
      %1755 = vmatmul.mubr.bf16.gmra.mrb[0].mxu0 %v1678
      %v1756 = vpop.f32.mrb[0].mxu0
      %v1757 = vadd.f32 0.0, %v1756
      %v1758 = vpop.f32.mrb[0].mxu0
      %v1759 = vadd.f32 0.0, %v1758
      %v1760 = vpop.f32.mrb[0].mxu0
      %v1761 = vadd.f32 0.0, %v1760
      %v1762 = vpop.f32.mrb[0].mxu0
      %v1763 = vadd.f32 0.0, %v1762
      %1764 = vmatprep.mubr.bf16.mxu0 0
      %1765 = vmatmul.mubr.bf16.gmra.mrb[0].mxu0 %v1681
      %v1766 = vpop.f32.mrb[0].mxu0
      %v1767 = vadd.f32 0.0, %v1766
      %v1768 = vpop.f32.mrb[0].mxu0
      %v1769 = vadd.f32 0.0, %v1768
      %v1770 = vpop.f32.mrb[0].mxu0
      %v1771 = vadd.f32 0.0, %v1770
      %v1772 = vpop.f32.mrb[0].mxu0
      %v1773 = vadd.f32 0.0, %v1772
      %1774 = vmatprep.mubr.bf16.mxu0 0
      %1775 = vmatmul.mubr.bf16.gmra.mrb[0].mxu0 %v1684
      %v1776 = vpop.f32.mrb[0].mxu0
      %v1777 = vadd.f32 0.0, %v1776
      %v1778 = vpop.f32.mrb[0].mxu0
      %v1779 = vadd.f32 0.0, %v1778
      %v1780 = vpop.f32.mrb[0].mxu0
      %v1781 = vadd.f32 0.0, %v1780
      %v1782 = vpop.f32.mrb[0].mxu0
      %v1783 = vadd.f32 0.0, %v1782
      %1784 = vmatprep.mubr.bf16.mxu0 0
      %1785 = vmatmul.mubr.bf16.gmra.mrb[0].mxu0 %v1687
      %v1786 = vpop.f32.mrb[0].mxu0
      %v1787 = vadd.f32 0.0, %v1786
      %v1788 = vpop.f32.mrb[0].mxu0
      %v1789 = vadd.f32 0.0, %v1788
      %v1790 = vpop.f32.mrb[0].mxu0
      %v1791 = vadd.f32 0.0, %v1790
      %v1792 = vpop.f32.mrb[0].mxu0
      %v1793 = vadd.f32 0.0, %v1792
      %1794 = vmatprep.mubr.bf16.mxu0 0
      %1795 = vmatmul.mubr.bf16.gmra.mrb[0].mxu0 %v1690
      %v1796 = vpop.f32.mrb[0].mxu0
      %v1797 = vadd.f32 0.0, %v1796
      %v1798 = vpop.f32.mrb[0].mxu0
      %v1799 = vadd.f32 0.0, %v1798
      %v1800 = vpop.f32.mrb[0].mxu0
      %v1801 = vadd.f32 0.0, %v1800
      %v1802 = vpop.f32.mrb[0].mxu0
      %v1803 = vadd.f32 0.0, %v1802
      %1804 = vdwg.mxu0
      %v1805 = vadd.f32 %v1581, %v1727
      %v1806 = vadd.f32 %v1582, %v1729
      %v1807 = vadd.f32 %v1583, %v1731
      %v1808 = vadd.f32 %v1584, %v1733
      %v1809 = vadd.f32 %v1585, %v1737
      %v1810 = vadd.f32 %v1586, %v1739
      %v1811 = vadd.f32 %v1587, %v1741
      %v1812 = vadd.f32 %v1588, %v1743
      %v1813 = vadd.f32 %v1589, %v1747
      %v1814 = vadd.f32 %v1590, %v1749
      %v1815 = vadd.f32 %v1591, %v1751
      %v1816 = vadd.f32 %v1592, %v1753
      %v1817 = vadd.f32 %v1593, %v1757
      %v1818 = vadd.f32 %v1594, %v1759
      %v1819 = vadd.f32 %v1595, %v1761
      %v1820 = vadd.f32 %v1596, %v1763
      %v1821 = vadd.f32 %v1597, %v1767
      %v1822 = vadd.f32 %v1598, %v1769
      %v1823 = vadd.f32 %v1599, %v1771
      %v1824 = vadd.f32 %v1600, %v1773
      %v1825 = vadd.f32 %v1601, %v1777
      %v1826 = vadd.f32 %v1602, %v1779
      %v1827 = vadd.f32 %v1603, %v1781
      %v1828 = vadd.f32 %v1604, %v1783
      %v1829 = vadd.f32 %v1605, %v1787
      %v1830 = vadd.f32 %v1606, %v1789
      %v1831 = vadd.f32 %v1607, %v1791
      %v1832 = vadd.f32 %v1608, %v1793
      %v1833 = vadd.f32 %v1609, %v1797
      %v1834 = vadd.f32 %v1610, %v1799
      %v1835 = vadd.f32 %v1611, %v1801
      %v1836 = vadd.f32 %v1612, %v1803
      %1837 = vst [vmem:[%s264] sm:$0xff] %v1805
      %1838 = vst [vmem:[%s264 + $0x8] sm:$0xff] %v1806
      %1839 = vst [vmem:[%s264 + $0x10] sm:$0xff] %v1807
      %1840 = vst [vmem:[%s264 + $0x18] sm:$0xff] %v1808
      %1841 = vst [vmem:[%s264 + $0x20] sm:$0xff] %v1809
      %1842 = vst [vmem:[%s264 + $0x28] sm:$0xff] %v1810
      %1843 = vst [vmem:[%s264 + $0x30] sm:$0xff] %v1811
      %1844 = vst [vmem:[%s264 + $0x38] sm:$0xff] %v1812
      %1845 = vst [vmem:[%s264 + $0x40] sm:$0xff] %v1813
      %1846 = vst [vmem:[%s264 + $0x48] sm:$0xff] %v1814
      %1847 = vst [vmem:[%s264 + $0x50] sm:$0xff] %v1815
      %1848 = vst [vmem:[%s264 + $0x58] sm:$0xff] %v1816
      %1849 = vst [vmem:[%s264 + $0x60] sm:$0xff] %v1817
      %1850 = vst [vmem:[%s264 + $0x68] sm:$0xff] %v1818
      %1851 = vst [vmem:[%s264 + $0x70] sm:$0xff] %v1819
      %1852 = vst [vmem:[%s264 + $0x78] sm:$0xff] %v1820
      %1853 = vst [vmem:[%s264 + $0x80] sm:$0xff] %v1821
      %1854 = vst [vmem:[%s264 + $0x88] sm:$0xff] %v1822
      %1855 = vst [vmem:[%s264 + $0x90] sm:$0xff] %v1823
      %1856 = vst [vmem:[%s264 + $0x98] sm:$0xff] %v1824
      %1857 = vst [vmem:[%s264 + $0xa0] sm:$0xff] %v1825
      %1858 = vst [vmem:[%s264 + $0xa8] sm:$0xff] %v1826
      %1859 = vst [vmem:[%s264 + $0xb0] sm:$0xff] %v1827
      %1860 = vst [vmem:[%s264 + $0xb8] sm:$0xff] %v1828
      %1861 = vst [vmem:[%s264 + $0xc0] sm:$0xff] %v1829
      %1862 = vst [vmem:[%s264 + $0xc8] sm:$0xff] %v1830
      %1863 = vst [vmem:[%s264 + $0xd0] sm:$0xff] %v1831
      %1864 = vst [vmem:[%s264 + $0xd8] sm:$0xff] %v1832
      %1865 = vst [vmem:[%s264 + $0xe0] sm:$0xff] %v1833
      %1866 = vst [vmem:[%s264 + $0xe8] sm:$0xff] %v1834
      %1867 = vst [vmem:[%s264 + $0xf0] sm:$0xff] %v1835
      %1868 = vst [vmem:[%s264 + $0xf8] sm:$0xff] %v1836
      %p1869 = scmp.eq.s32.totalorder %s22, 4
      // Predicated region
      $region41: #{cba_forward.2} parent=35 // pred_check
        %p1870 = pneg %p1869
      $region42: #{cba_forward.2} parent=35 // pred_check_branch
        %1872 = sbr.rel (%p1870) target = $region44
      $region43: #{cba_forward.2} parent=35 // pred_region
        %v1873 = vld [vmem:[%s264] sm:$0xff]
        %v1874 = vld [vmem:[%s264 + $0x8] sm:$0xff]
        %v1875 = vld [vmem:[%s264 + $0x10] sm:$0xff]
        %v1876 = vld [vmem:[%s264 + $0x18] sm:$0xff]
        %v1877 = vld [vmem:[%s264 + $0x20] sm:$0xff]
        %v1878 = vld [vmem:[%s264 + $0x28] sm:$0xff]
        %v1879 = vld [vmem:[%s264 + $0x30] sm:$0xff]
        %v1880 = vld [vmem:[%s264 + $0x38] sm:$0xff]
        %v1881 = vld [vmem:[%s264 + $0x40] sm:$0xff]
        %v1882 = vld [vmem:[%s264 + $0x48] sm:$0xff]
        %v1883 = vld [vmem:[%s264 + $0x50] sm:$0xff]
        %v1884 = vld [vmem:[%s264 + $0x58] sm:$0xff]
        %v1885 = vld [vmem:[%s264 + $0x60] sm:$0xff]
        %v1886 = vld [vmem:[%s264 + $0x68] sm:$0xff]
        %v1887 = vld [vmem:[%s264 + $0x70] sm:$0xff]
        %v1888 = vld [vmem:[%s264 + $0x78] sm:$0xff]
        %v1889 = vld [vmem:[%s264 + $0x80] sm:$0xff]
        %v1890 = vld [vmem:[%s264 + $0x88] sm:$0xff]
        %v1891 = vld [vmem:[%s264 + $0x90] sm:$0xff]
        %v1892 = vld [vmem:[%s264 + $0x98] sm:$0xff]
        %v1893 = vld [vmem:[%s264 + $0xa0] sm:$0xff]
        %v1894 = vld [vmem:[%s264 + $0xa8] sm:$0xff]
        %v1895 = vld [vmem:[%s264 + $0xb0] sm:$0xff]
        %v1896 = vld [vmem:[%s264 + $0xb8] sm:$0xff]
        %v1897 = vld [vmem:[%s264 + $0xc0] sm:$0xff]
        %v1898 = vld [vmem:[%s264 + $0xc8] sm:$0xff]
        %v1899 = vld [vmem:[%s264 + $0xd0] sm:$0xff]
        %v1900 = vld [vmem:[%s264 + $0xd8] sm:$0xff]
        %v1901 = vld [vmem:[%s264 + $0xe0] sm:$0xff]
        %v1902 = vld [vmem:[%s264 + $0xe8] sm:$0xff]
        %v1903 = vld [vmem:[%s264 + $0xf0] sm:$0xff]
        %v1904 = vld [vmem:[%s264 + $0xf8] sm:$0xff]
        %v1905 = vld [vmem:[%s3] sm:$0xff]
        %v1906 = vld [vmem:[%s3 + $0x8] sm:$0xff]
        %v1907 = vld [vmem:[%s3 + $0x10] sm:$0xff]
        %v1908 = vld [vmem:[%s3 + $0x18] sm:$0xff]
        %v1909 = vld [vmem:[%s3 + $0x20] sm:$0xff]
        %v1910 = vld [vmem:[%s3 + $0x28] sm:$0xff]
        %v1911 = vld [vmem:[%s3 + $0x30] sm:$0xff]
        %v1912 = vld [vmem:[%s3 + $0x38] sm:$0xff]
        %v1913 = vld [vmem:[%s3 + $0x40] sm:$0xff]
        %v1914 = vld [vmem:[%s3 + $0x48] sm:$0xff]
        %v1915 = vld [vmem:[%s3 + $0x50] sm:$0xff]
        %v1916 = vld [vmem:[%s3 + $0x58] sm:$0xff]
        %v1917 = vld [vmem:[%s3 + $0x60] sm:$0xff]
        %v1918 = vld [vmem:[%s3 + $0x68] sm:$0xff]
        %v1919 = vld [vmem:[%s3 + $0x70] sm:$0xff]
        %v1920 = vld [vmem:[%s3 + $0x78] sm:$0xff]
        %1922 = vset.pattern.permute.xlu0 0
        %1923 = vperm.xlu0 %1922, %v1905
        %v1924 = vpop.permute.xlu0 %1923
        %1927 = vset.pattern.permute.xlu0 0
        %1928 = vperm.xlu0 %1927, %v1906
        %v1929 = vpop.permute.xlu0 %1928
        %1932 = vset.pattern.permute.xlu0 0
        %1933 = vperm.xlu0 %1932, %v1907
        %v1934 = vpop.permute.xlu0 %1933
        %1937 = vset.pattern.permute.xlu0 0
        %1938 = vperm.xlu0 %1937, %v1908
        %v1939 = vpop.permute.xlu0 %1938
        %1942 = vset.pattern.permute.xlu0 0
        %1943 = vperm.xlu0 %1942, %v1909
        %v1944 = vpop.permute.xlu0 %1943
        %1947 = vset.pattern.permute.xlu0 0
        %1948 = vperm.xlu0 %1947, %v1910
        %v1949 = vpop.permute.xlu0 %1948
        %1952 = vset.pattern.permute.xlu0 0
        %1953 = vperm.xlu0 %1952, %v1911
        %v1954 = vpop.permute.xlu0 %1953
        %1957 = vset.pattern.permute.xlu0 0
        %1958 = vperm.xlu0 %1957, %v1912
        %v1959 = vpop.permute.xlu0 %1958
        %1962 = vset.pattern.permute.xlu0 0
        %1963 = vperm.xlu0 %1962, %v1913
        %v1964 = vpop.permute.xlu0 %1963
        %1967 = vset.pattern.permute.xlu0 0
        %1968 = vperm.xlu0 %1967, %v1914
        %v1969 = vpop.permute.xlu0 %1968
        %1972 = vset.pattern.permute.xlu0 0
        %1973 = vperm.xlu0 %1972, %v1915
        %v1974 = vpop.permute.xlu0 %1973
        %1977 = vset.pattern.permute.xlu0 0
        %1978 = vperm.xlu0 %1977, %v1916
        %v1979 = vpop.permute.xlu0 %1978
        %1982 = vset.pattern.permute.xlu0 0
        %1983 = vperm.xlu0 %1982, %v1917
        %v1984 = vpop.permute.xlu0 %1983
        %1987 = vset.pattern.permute.xlu0 0
        %1988 = vperm.xlu0 %1987, %v1918
        %v1989 = vpop.permute.xlu0 %1988
        %1992 = vset.pattern.permute.xlu0 0
        %1993 = vperm.xlu0 %1992, %v1919
        %v1994 = vpop.permute.xlu0 %1993
        %1997 = vset.pattern.permute.xlu0 0
        %1998 = vperm.xlu0 %1997, %v1920
        %v1999 = vpop.permute.xlu0 %1998
        %v2001 = vmul.f32 %v1873, %v1924
        %v2002 = vmul.f32 %v1874, %v1924
        %v2003 = vmul.f32 %v1875, %v1929
        %v2004 = vmul.f32 %v1876, %v1929
        %v2005 = vmul.f32 %v1877, %v1934
        %v2006 = vmul.f32 %v1878, %v1934
        %v2007 = vmul.f32 %v1879, %v1939
        %v2008 = vmul.f32 %v1880, %v1939
        %v2009 = vmul.f32 %v1881, %v1944
        %v2010 = vmul.f32 %v1882, %v1944
        %v2011 = vmul.f32 %v1883, %v1949
        %v2012 = vmul.f32 %v1884, %v1949
        %v2013 = vmul.f32 %v1885, %v1954
        %v2014 = vmul.f32 %v1886, %v1954
        %v2015 = vmul.f32 %v1887, %v1959
        %v2016 = vmul.f32 %v1888, %v1959
        %v2017 = vmul.f32 %v1889, %v1964
        %v2018 = vmul.f32 %v1890, %v1964
        %v2019 = vmul.f32 %v1891, %v1969
        %v2020 = vmul.f32 %v1892, %v1969
        %v2021 = vmul.f32 %v1893, %v1974
        %v2022 = vmul.f32 %v1894, %v1974
        %v2023 = vmul.f32 %v1895, %v1979
        %v2024 = vmul.f32 %v1896, %v1979
        %v2025 = vmul.f32 %v1897, %v1984
        %v2026 = vmul.f32 %v1898, %v1984
        %v2027 = vmul.f32 %v1899, %v1989
        %v2028 = vmul.f32 %v1900, %v1989
        %v2029 = vmul.f32 %v1901, %v1994
        %v2030 = vmul.f32 %v1902, %v1994
        %v2031 = vmul.f32 %v1903, %v1999
        %v2032 = vmul.f32 %v1904, %v1999
        %v2033 = vadd.f32 %v2001, %v2003
        %v2034 = vadd.f32 %v2033, %v2005
        %v2035 = vadd.f32 %v2034, %v2007
        %v2036 = vadd.f32 %v2035, %v2009
        %v2037 = vadd.f32 %v2036, %v2011
        %v2038 = vadd.f32 %v2037, %v2013
        %v2039 = vadd.f32 %v2038, %v2015
        %v2040 = vadd.f32 %v2039, %v2017
        %v2041 = vadd.f32 %v2040, %v2019
        %v2042 = vadd.f32 %v2041, %v2021
        %v2043 = vadd.f32 %v2042, %v2023
        %v2044 = vadd.f32 %v2043, %v2025
        %v2045 = vadd.f32 %v2044, %v2027
        %v2046 = vadd.f32 %v2045, %v2029
        %v2047 = vadd.f32 %v2046, %v2031
        %v2048 = vrot.slane %v2047, 4
        %v2049 = vadd.f32 %v2047, %v2048
        %v2050 = vrot.slane %v2049, 2
        %v2051 = vadd.f32 %v2049, %v2050
        %v2052 = vrot.slane %v2051, 1
        %v2053 = vadd.f32 %v2051, %v2052
        %v2054 = vadd.f32 %v2002, %v2004
        %v2055 = vadd.f32 %v2054, %v2006
        %v2056 = vadd.f32 %v2055, %v2008
        %v2057 = vadd.f32 %v2056, %v2010
        %v2058 = vadd.f32 %v2057, %v2012
        %v2059 = vadd.f32 %v2058, %v2014
        %v2060 = vadd.f32 %v2059, %v2016
        %v2061 = vadd.f32 %v2060, %v2018
        %v2062 = vadd.f32 %v2061, %v2020
        %v2063 = vadd.f32 %v2062, %v2022
        %v2064 = vadd.f32 %v2063, %v2024
        %v2065 = vadd.f32 %v2064, %v2026
        %v2066 = vadd.f32 %v2065, %v2028
        %v2067 = vadd.f32 %v2066, %v2030
        %v2068 = vadd.f32 %v2067, %v2032
        %v2069 = vrot.slane %v2068, 4
        %v2070 = vadd.f32 %v2068, %v2069
        %v2071 = vrot.slane %v2070, 2
        %v2072 = vadd.f32 %v2070, %v2071
        %v2073 = vrot.slane %v2072, 1
        %v2074 = vadd.f32 %v2072, %v2073
        %v2077 = vcombine.low %v2053, %v2074
        %v2079 = vunpack.c.l.s4 1966171168
        %v2080 = vunpack.c.0.s8 %v2079
        %v2081 = vlaneseq
        %v2082 = vshrl.u32 %v2081, 7
        %v2083 = vsub.s32 %v2080, %v2082
        %v2084 = vrot.slane %v2077, %v2083
        %v2086 = vunpack.c.l.s4 1966171168
        %v2087 = vunpack.c.0.s8 %v2086
        %v2088 = vlaneseq
        %v2089 = vshrl.u32 %v2088, 7
        %v2090 = vsub.s32 %v2087, %v2089
        %v2091 = vrot.slane %v2084, %v2090
        %v2093 = vlaneseq
        %vm2094 = vcmp.ge.s32.totalorder %v2093, 0
        %vm2095 = vcmp.lt.s32.totalorder %v2093, 256
        %vm2096 = vmand %vm2094, %vm2095
        %2097 = vst.msk [vmem:[%s269] ss:$2 sm:$0x3] %vm2096, %v2091
        %v2098 = vmul.f32 %v2001, %v1873
        %v2099 = vmul.f32 %v2002, %v1874
        %v2100 = vmul.f32 %v2003, %v1875
        %v2101 = vmul.f32 %v2004, %v1876
        %v2102 = vmul.f32 %v2005, %v1877
        %v2103 = vmul.f32 %v2006, %v1878
        %v2104 = vmul.f32 %v2007, %v1879
        %v2105 = vmul.f32 %v2008, %v1880
        %v2106 = vmul.f32 %v2009, %v1881
        %v2107 = vmul.f32 %v2010, %v1882
        %v2108 = vmul.f32 %v2011, %v1883
        %v2109 = vmul.f32 %v2012, %v1884
        %v2110 = vmul.f32 %v2013, %v1885
        %v2111 = vmul.f32 %v2014, %v1886
        %v2112 = vmul.f32 %v2015, %v1887
        %v2113 = vmul.f32 %v2016, %v1888
        %v2114 = vmul.f32 %v2017, %v1889
        %v2115 = vmul.f32 %v2018, %v1890
        %v2116 = vmul.f32 %v2019, %v1891
        %v2117 = vmul.f32 %v2020, %v1892
        %v2118 = vmul.f32 %v2021, %v1893
        %v2119 = vmul.f32 %v2022, %v1894
        %v2120 = vmul.f32 %v2023, %v1895
        %v2121 = vmul.f32 %v2024, %v1896
        %v2122 = vmul.f32 %v2025, %v1897
        %v2123 = vmul.f32 %v2026, %v1898
        %v2124 = vmul.f32 %v2027, %v1899
        %v2125 = vmul.f32 %v2028, %v1900
        %v2126 = vmul.f32 %v2029, %v1901
        %v2127 = vmul.f32 %v2030, %v1902
        %v2128 = vmul.f32 %v2031, %v1903
        %v2129 = vmul.f32 %v2032, %v1904
        %v2130 = vadd.f32 %v2098, %v2100
        %v2131 = vadd.f32 %v2130, %v2102
        %v2132 = vadd.f32 %v2131, %v2104
        %v2133 = vadd.f32 %v2132, %v2106
        %v2134 = vadd.f32 %v2133, %v2108
        %v2135 = vadd.f32 %v2134, %v2110
        %v2136 = vadd.f32 %v2135, %v2112
        %v2137 = vadd.f32 %v2136, %v2114
        %v2138 = vadd.f32 %v2137, %v2116
        %v2139 = vadd.f32 %v2138, %v2118
        %v2140 = vadd.f32 %v2139, %v2120
        %v2141 = vadd.f32 %v2140, %v2122
        %v2142 = vadd.f32 %v2141, %v2124
        %v2143 = vadd.f32 %v2142, %v2126
        %v2144 = vadd.f32 %v2143, %v2128
        %v2145 = vrot.slane %v2144, 4
        %v2146 = vadd.f32 %v2144, %v2145
        %v2147 = vrot.slane %v2146, 2
        %v2148 = vadd.f32 %v2146, %v2147
        %v2149 = vrot.slane %v2148, 1
        %v2150 = vadd.f32 %v2148, %v2149
        %v2151 = vadd.f32 %v2099, %v2101
        %v2152 = vadd.f32 %v2151, %v2103
        %v2153 = vadd.f32 %v2152, %v2105
        %v2154 = vadd.f32 %v2153, %v2107
        %v2155 = vadd.f32 %v2154, %v2109
        %v2156 = vadd.f32 %v2155, %v2111
        %v2157 = vadd.f32 %v2156, %v2113
        %v2158 = vadd.f32 %v2157, %v2115
        %v2159 = vadd.f32 %v2158, %v2117
        %v2160 = vadd.f32 %v2159, %v2119
        %v2161 = vadd.f32 %v2160, %v2121
        %v2162 = vadd.f32 %v2161, %v2123
        %v2163 = vadd.f32 %v2162, %v2125
        %v2164 = vadd.f32 %v2163, %v2127
        %v2165 = vadd.f32 %v2164, %v2129
        %v2166 = vrot.slane %v2165, 4
        %v2167 = vadd.f32 %v2165, %v2166
        %v2168 = vrot.slane %v2167, 2
        %v2169 = vadd.f32 %v2167, %v2168
        %v2170 = vrot.slane %v2169, 1
        %v2171 = vadd.f32 %v2169, %v2170
        %v2174 = vcombine.low %v2150, %v2171
        %v2176 = vunpack.c.l.s4 1966171168
        %v2177 = vunpack.c.0.s8 %v2176
        %v2178 = vlaneseq
        %v2179 = vshrl.u32 %v2178, 7
        %v2180 = vsub.s32 %v2177, %v2179
        %v2181 = vrot.slane %v2174, %v2180
        %v2183 = vunpack.c.l.s4 1966171168
        %v2184 = vunpack.c.0.s8 %v2183
        %v2185 = vlaneseq
        %v2186 = vshrl.u32 %v2185, 7
        %v2187 = vsub.s32 %v2184, %v2186
        %v2188 = vrot.slane %v2181, %v2187
        %s2190 = scalar_lea.vmem %s269, 1
        %2191 = vst.msk [vmem:[%s2190] ss:$2 sm:$0x3] %vm2096, %v2188
      $region44: #{cba_forward.2} parent=35 // pred_fallthru
        _
      %p2192 = scmp.lt.s32.totalorder %s21, 1
      %s2193 = scalar_select %p2192, %s21, 1
      %s2194 = smul.addr %s2193, 32
      %s2195 = smul.addr %s2194, 8
      %s2196 = scalar_lea.vmem %s4, %s2195
      %p2197 = scmp.lt.s32.totalorder %s21, 1
      %s2198 = scalar_select %p2197, %s21, 1
      %s2199 = smul.addr %s2198, 2
      %s2200 = smul.addr %s2199, 2
      %s2201 = scalar_lea.vmem %s5, %s2200
      // Predicated region
      $region45: #{cba_forward.2} parent=35 // pred_check
        %p2202 = pneg %p141
      $region46: #{cba_forward.2} parent=35 // pred_check_branch
        %2204 = sbr.rel (%p2202) target = $region48
      $region47: #{cba_forward.2} parent=35 // pred_region
        _
      $region48: #{cba_forward.2} parent=35 // pred_fallthru
        _
      // Predicated region
      $region49: #{cba_forward.2} parent=35 // pred_check
        %p2205 = pneg %p167
      $region50: #{cba_forward.2} parent=35 // pred_check_branch
        %2207 = sbr.rel (%p2205) target = $region52
      $region51: #{cba_forward.2} parent=35 // pred_region
        _
      $region52: #{cba_forward.2} parent=35 // pred_fallthru
        _
    $region36: #{cba_forward.2} parent=5 // pred_fallthru
      _
    %p2208 = scmp.le.s32.totalorder 2, %s12
    // Predicated region
    $region53: #{cba_forward.2} parent=5 // pred_check
      %p2209 = pneg %p2208
    $region54: #{cba_forward.2} parent=5 // pred_check_branch
      %2211 = sbr.rel (%p2209) target = $region56
    $region55: #{cba_forward.2} parent=5 // pred_region
      %s2212 = ssub.s32 %s12, 2
      // Predicated region
      $region57: #{cba_forward.2} parent=55 // pred_check
        %p2213 = pneg %p147
      $region58: #{cba_forward.2} parent=55 // pred_check_branch
        %2215 = sbr.rel (%p2213) target = $region60
      $region59: #{cba_forward.2} parent=55 // pred_region
        %p2216 = scmp.lt.s32.totalorder %s23, 1
        %s2217 = scalar_select %p2216, %s23, 1
        %s2218 = smul.addr %s2217, 32
        %s2219 = smul.addr %s2218, 8
        %s2220 = scalar_lea.vmem %s4, %s2219
      $region60: #{cba_forward.2} parent=55 // pred_fallthru
        _
      // Predicated region
      $region61: #{cba_forward.2} parent=55 // pred_check
        %p2221 = pneg %p173
      $region62: #{cba_forward.2} parent=55 // pred_check_branch
        %2223 = sbr.rel (%p2221) target = $region64
      $region63: #{cba_forward.2} parent=55 // pred_region
        %p2224 = scmp.lt.s32.totalorder %s23, 1
        %s2225 = scalar_select %p2224, %s23, 1
        %s2226 = smul.addr %s2225, 2
        %s2227 = smul.addr %s2226, 2
        %s2228 = scalar_lea.vmem %s5, %s2227
      $region64: #{cba_forward.2} parent=55 // pred_fallthru
        _
    $region56: #{cba_forward.2} parent=5 // pred_fallthru
      _
  $region6: #{cba_forward.2} parent=0 // loop_footer
    %s16 = sadd.s32 1, %s12
  $region7: #{cba_forward.2} parent=0 // loop_footer_branch
    %11 = sbr.rel target = $region3
  $region8: #{cba_forward.2} parent=0 // loop_exit
    _

</llo_original>
